<compile_context>
chip_gen: v7x
topology: tpu7x:2x2x1
jax: 0.10.0
libtpu: 0.0.40
codegen_flags: <defaults>
</compile_context>

<pallas_src>
import functools

import jax
import jax.numpy as jnp
from jax import lax
from jax.experimental import pallas as pl
from jax.experimental.pallas import tpu as pltpu


def _sigmoid(z):
    return 1.0 / (1.0 + jnp.exp(-z))


def _lstm_cell(x, h, c, wi, wh, b, valid, H):
    """One LSTM cell step with length masking.

    x:(B,Din) h,c:(B,H) wi:(Din,4H) wh:(H,4H) b:(1,4H) valid:(B,1) bool
    Returns (h_state, c_state, y_out): state is frozen where ~valid, y is 0 there.
    """
    gates = (jnp.dot(x, wi, preferred_element_type=jnp.float32)
             + jnp.dot(h, wh, preferred_element_type=jnp.float32)
             + b)                                        # (B, 4H), gate order i,f,g,o
    i = _sigmoid(gates[:, 0 * H:1 * H])
    f = _sigmoid(gates[:, 1 * H:2 * H])
    g = jnp.tanh(gates[:, 2 * H:3 * H])
    o = _sigmoid(gates[:, 3 * H:4 * H])
    c_new = f * c + i * g
    h_new = o * jnp.tanh(c_new)
    c_out = jnp.where(valid, c_new, c)
    h_out = jnp.where(valid, h_new, h)
    y = jnp.where(valid, h_new, jnp.float32(0.0))
    return h_out, c_out, y


def _lstm_bi_kernel(T, H, lens_ref, xf_ref, xb_ref,
                    wif_ref, whf_ref, bf_ref,
                    wib_ref, whb_ref, bb_ref,
                    of_ref, ob_ref,
                    hf_sc, cf_sc, hb_sc, cb_sc):
    """Fused forward+backward LSTM layer; grid axis 0 = timestep."""
    t = pl.program_id(0)

    @pl.when(t == 0)
    def _():
        hf_sc[...] = jnp.zeros_like(hf_sc)
        cf_sc[...] = jnp.zeros_like(cf_sc)
        hb_sc[...] = jnp.zeros_like(hb_sc)
        cb_sc[...] = jnp.zeros_like(cb_sc)

    lens = lens_ref[...]                                  # (B, 1) int32

    # ---- forward direction: actual time index = t ----
    valid_f = lens > t
    h_new, c_new, y = _lstm_cell(xf_ref[...], hf_sc[...], cf_sc[...],
                                 wif_ref[...], whf_ref[...], bf_ref[...],
                                 valid_f, H)
    hf_sc[...] = h_new
    cf_sc[...] = c_new
    of_ref[...] = y

    # ---- backward direction: actual time index = T-1-t ----
    valid_b = lens > (T - 1 - t)
    h_new, c_new, y = _lstm_cell(xb_ref[...], hb_sc[...], cb_sc[...],
                                 wib_ref[...], whb_ref[...], bb_ref[...],
                                 valid_b, H)
    hb_sc[...] = h_new
    cb_sc[...] = c_new
    ob_ref[...] = y


def _lstm_uni_kernel(T, H, lens_ref, x_ref, wi_ref, wh_ref, b_ref,
                     out_ref, h_sc, c_sc):
    """Single-direction LSTM layer; grid axis 0 = timestep."""
    t = pl.program_id(0)

    @pl.when(t == 0)
    def _():
        h_sc[...] = jnp.zeros_like(h_sc)
        c_sc[...] = jnp.zeros_like(c_sc)

    valid = lens_ref[...] > t
    h_new, c_new, y = _lstm_cell(x_ref[...], h_sc[...], c_sc[...],
                                 wi_ref[...], wh_ref[...], b_ref[...],
                                 valid, H)
    h_sc[...] = h_new
    c_sc[...] = c_new
    out_ref[...] = y


def _lstm_layer(x_tm, lens_col, layer_params, bidirectional):
    """Run one LSTM layer. x_tm: (T, B, Din) time-major. Returns (T, B, H*dirs)."""
    T, B, Din = x_tm.shape

    def to_kernel_layout(w_ih, w_hh, b_ih, b_hh):
        # PyTorch layout: w_ih (4H, Din), w_hh (4H, H), biases (4H,)
        wi = jnp.transpose(w_ih).astype(jnp.float32)          # (Din, 4H)
        wh = jnp.transpose(w_hh).astype(jnp.float32)          # (H,   4H)
        b = (b_ih + b_hh).astype(jnp.float32)[None, :]        # (1,   4H)
        return wi, wh, b

    H = layer_params[0][1].shape[1]                           # w_hh: (4H, H)
    full2 = lambda a: pl.BlockSpec(a.shape, lambda t: (0, 0))

    if bidirectional:
        wif, whf, bf = to_kernel_layout(*layer_params[0])
        wib, whb, bb = to_kernel_layout(*layer_params[1])
        out_f, out_b = pl.pallas_call(
            functools.partial(_lstm_bi_kernel, T, H),
            grid=(T,),
            out_shape=(jax.ShapeDtypeStruct((T, B, H), jnp.float32),
                       jax.ShapeDtypeStruct((T, B, H), jnp.float32)),
            in_specs=[
                full2(lens_col),                                          # lengths
                pl.BlockSpec((None, B, Din), lambda t: (t, 0, 0)),        # x (fwd order)
                pl.BlockSpec((None, B, Din), lambda t: (T - 1 - t, 0, 0)),  # x (bwd order)
                full2(wif), full2(whf), full2(bf),
                full2(wib), full2(whb), full2(bb),
            ],
            out_specs=(
                pl.BlockSpec((None, B, H), lambda t: (t, 0, 0)),
                pl.BlockSpec((None, B, H), lambda t: (T - 1 - t, 0, 0)),
            ),
            scratch_shapes=[pltpu.VMEM((B, H), jnp.float32)] * 4,
            compiler_params=pltpu.CompilerParams(
                dimension_semantics=("arbitrary",)),
        )(lens_col, x_tm, x_tm, wif, whf, bf, wib, whb, bb)
        return jnp.concatenate([out_f, out_b], axis=-1)
    else:
        wi, wh, b = to_kernel_layout(*layer_params[0])
        out = pl.pallas_call(
            functools.partial(_lstm_uni_kernel, T, H),
            grid=(T,),
            out_shape=jax.ShapeDtypeStruct((T, B, H), jnp.float32),
            in_specs=[
                full2(lens_col),
                pl.BlockSpec((None, B, Din), lambda t: (t, 0, 0)),
                full2(wi), full2(wh), full2(b),
            ],
            out_specs=pl.BlockSpec((None, B, H), lambda t: (t, 0, 0)),
            scratch_shapes=[pltpu.VMEM((B, H), jnp.float32)] * 2,
            compiler_params=pltpu.CompilerParams(
                dimension_semantics=("arbitrary",)),
        )(lens_col, x_tm, wi, wh, b)
        return out


@functools.partial(jax.jit, static_argnames=("bidirectional",))
def rnn_forward(text, text_len, params, *, bidirectional):
    """Mirrors RNN.forward: (B, T, D), (B,) -> (B, T, H*num_dirs), zeros at t>=len.

    (pad_packed_sequence additionally truncates the time axis to max(text_len);
    callers can slice the result, see __main__.)
    """
    B, T, D = text.shape
    x = jnp.transpose(text.astype(jnp.float32), (1, 0, 2))    # time-major (T, B, D)
    lens = text_len.astype(jnp.int32).reshape(B, 1)
    for layer_params in params:
        x = _lstm_layer(x, lens, layer_params, bidirectional)
        # TODO(synk): inter-layer dropout is a train-mode-only op in nn.LSTM;
        # inference forward (eval mode) applies no dropout, so it is omitted.
    return jnp.transpose(x, (1, 0, 2))                        # (B, T, H*dirs)


# --------------------------- pure-JAX reference ----------------------------

def lstm_reference(text, text_len, params, bidirectional):
    B, T, D = text.shape
    x = text.astype(jnp.float32)
    lens = text_len.astype(jnp.int32)

    def run_dir(inp, w_ih, w_hh, b_ih, b_hh, reverse):
        H = w_hh.shape[1]

        def cell(carry, xt_t):
            h, c = carry
            xt, t = xt_t
            gates = xt @ w_ih.T + h @ w_hh.T + b_ih + b_hh
            i = _sigmoid(gates[:, :H])
            f = _sigmoid(gates[:, H:2 * H])
            g = jnp.tanh(gates[:, 2 * H:3 * H])
            o = _sigmoid(gates[:, 3 * H:])
            c_new = f * c + i * g
            h_new = o * jnp.tanh(c_new)
            valid = (lens > t)[:, None]
            c = jnp.where(valid, c_new, c)
            h = jnp.where(valid, h_new, h)
            y = jnp.where(valid, h_new, 0.0)
            return (h, c), y

        xs = jnp.transpose(inp, (1, 0, 2))
        ts = jnp.arange(T)
        if reverse:
            xs, ts = xs[::-1], ts[::-1]
        (_, _), ys = lax.scan(cell, (jnp.zeros((B, H)), jnp.zeros((B, H))), (xs, ts))
        if reverse:
            ys = ys[::-1]
        return jnp.transpose(ys, (1, 0, 2))

    h_in = x
    for lp in params:
        if bidirectional:
            of = run_dir(h_in, *lp[0], reverse=False)
            ob = run_dir(h_in, *lp[1], reverse=True)
            h_in = jnp.concatenate([of, ob], axis=-1)
        else:
            h_in = run_dir(h_in, *lp[0], reverse=False)
    return h_in


def init_lstm_params(key, input_dim, hidden_dim, num_layers, bidirectional):
    """PyTorch-layout LSTM params: per layer, per direction (w_ih, w_hh, b_ih, b_hh)."""
    num_dir = 2 if bidirectional else 1
    scale = 1.0 / (hidden_dim ** 0.5)
    params = []
    for layer in range(num_layers):
        in_dim = input_dim if layer == 0 else hidden_dim * num_dir
        dirs = []
        for _ in range(num_dir):
            key, k1, k2, k3, k4 = jax.random.split(key, 5)
            dirs.append((
                jax.random.uniform(k1, (4 * hidden_dim, in_dim), jnp.float32, -scale, scale),
                jax.random.uniform(k2, (4 * hidden_dim, hidden_dim), jnp.float32, -scale, scale),
                jax.random.uniform(k3, (4 * hidden_dim,), jnp.float32, -scale, scale),
                jax.random.uniform(k4, (4 * hidden_dim,), jnp.float32, -scale, scale),
            ))
        params.append(tuple(dirs))
    return tuple(params)


if __name__ == "__main__":
    B, T, D, H, L = 4, 12, 16, 32, 2
    bidirectional = True                       # dropout=0.3 in the module: train-mode only

    key = jax.random.PRNGKey(0)
    kp, kx = jax.random.split(key)
    params = init_lstm_params(kp, D, H, L, bidirectional)
    text = jax.random.normal(kx, (B, T, D), dtype=jnp.float32)
    text_len = jnp.array([12, 7, 3, 0], dtype=jnp.int32)   # includes a zero-length row

    out = rnn_forward(text, text_len, params, bidirectional=bidirectional)
    out = jax.block_until_ready(out)

    ref = lstm_reference(text, text_len, params, bidirectional)
    err = float(jnp.max(jnp.abs(out - ref)))
    assert err < 1e-4, f"max abs error {err}"

    # pad_packed_sequence truncates the time axis to max(text_len)
    t_eff = int(jnp.max(text_len))
    final = out[:, :t_eff, :]
    assert final.shape == (B, t_eff, 2 * H if bidirectional else H)
    # padded / zero-length positions must be exactly zero (pack/unpack semantics)
    mask = (jnp.arange(T)[None, :] >= text_len[:, None])[:, :, None]
    assert float(jnp.max(jnp.abs(jnp.where(mask, out, 0.0)))) == 0.0

    print("KERNEL_OK")
</pallas_src>

<mosaic_0001>
module attributes {stable_mosaic.version = 11 : i64} {
  func.func @_lstm_bi_kernel(%arg0: i32, %arg1: memref<4x1xi32, #tpu.memory_space<vmem>>, %arg2: memref<1x4x16xf32, #tpu.memory_space<vmem>>, %arg3: memref<1x4x16xf32, #tpu.memory_space<vmem>>, %arg4: memref<16x128xf32, #tpu.memory_space<vmem>>, %arg5: memref<32x128xf32, #tpu.memory_space<vmem>>, %arg6: memref<1x128xf32, #tpu.memory_space<vmem>>, %arg7: memref<16x128xf32, #tpu.memory_space<vmem>>, %arg8: memref<32x128xf32, #tpu.memory_space<vmem>>, %arg9: memref<1x128xf32, #tpu.memory_space<vmem>>, %arg10: memref<1x4x32xf32, #tpu.memory_space<vmem>>, %arg11: memref<1x4x32xf32, #tpu.memory_space<vmem>>, %arg12: memref<4x32xf32, #tpu.memory_space<vmem>>, %arg13: memref<4x32xf32, #tpu.memory_space<vmem>>, %arg14: memref<4x32xf32, #tpu.memory_space<vmem>>, %arg15: memref<4x32xf32, #tpu.memory_space<vmem>>) attributes {dimension_semantics = [#tpu.dimension_semantics<arbitrary>], iteration_bounds = array<i64: 12>, scalar_prefetch = 0 : i64, scratch_operands = 4 : i64, tpu.core_type = #tpu.core_type<tc>, window_params = [{pipeline_mode = #tpu.pipeline_mode<synchronous>, transform_indices = @transform_0, window_bounds = array<i64: 4, 1>}, {transform_indices = @transform_1, window_bounds = array<i64: 1, 4, 16>}, {transform_indices = @transform_2, window_bounds = array<i64: 1, 4, 16>}, {pipeline_mode = #tpu.pipeline_mode<synchronous>, transform_indices = @transform_3, window_bounds = array<i64: 16, 128>}, {pipeline_mode = #tpu.pipeline_mode<synchronous>, transform_indices = @transform_4, window_bounds = array<i64: 32, 128>}, {pipeline_mode = #tpu.pipeline_mode<synchronous>, transform_indices = @transform_5, window_bounds = array<i64: 1, 128>}, {pipeline_mode = #tpu.pipeline_mode<synchronous>, transform_indices = @transform_6, window_bounds = array<i64: 16, 128>}, {pipeline_mode = #tpu.pipeline_mode<synchronous>, transform_indices = @transform_7, window_bounds = array<i64: 32, 128>}, {pipeline_mode = #tpu.pipeline_mode<synchronous>, transform_indices = @transform_8, window_bounds = array<i64: 1, 128>}, {transform_indices = @transform_9, window_bounds = array<i64: 1, 4, 32>}, {transform_indices = @transform_10, window_bounds = array<i64: 1, 4, 32>}]} {
    %c0_i32 = arith.constant 0 : i32
    %0 = arith.cmpi eq, %arg0, %c0_i32 : i32
    %1 = arith.extui %0 : i1 to i32
    %c0_i32_0 = arith.constant 0 : i32
    %2 = arith.cmpi ne, %1, %c0_i32_0 : i32
    scf.if %2 {
      %cst_65 = arith.constant 0.000000e+00 : f32
      %125 = vector.broadcast %cst_65 : f32 to vector<4x32xf32>
      %c0_66 = arith.constant 0 : index
      %c0_67 = arith.constant 0 : index
      %126 = vector.load %arg12[%c0_66, %c0_67] : memref<4x32xf32, #tpu.memory_space<vmem>>, vector<4x32xf32>
      tpu.vector_store %arg12[%c0_66, %c0_67], %125 {strides = array<i32>} : memref<4x32xf32, #tpu.memory_space<vmem>>, vector<4x32xf32>,
      %cst_68 = arith.constant 0.000000e+00 : f32
      %127 = vector.broadcast %cst_68 : f32 to vector<4x32xf32>
      %c0_69 = arith.constant 0 : index
      %c0_70 = arith.constant 0 : index
      %128 = vector.load %arg13[%c0_69, %c0_70] : memref<4x32xf32, #tpu.memory_space<vmem>>, vector<4x32xf32>
      tpu.vector_store %arg13[%c0_69, %c0_70], %127 {strides = array<i32>} : memref<4x32xf32, #tpu.memory_space<vmem>>, vector<4x32xf32>,
      %cst_71 = arith.constant 0.000000e+00 : f32
      %129 = vector.broadcast %cst_71 : f32 to vector<4x32xf32>
      %c0_72 = arith.constant 0 : index
      %c0_73 = arith.constant 0 : index
      %130 = vector.load %arg14[%c0_72, %c0_73] : memref<4x32xf32, #tpu.memory_space<vmem>>, vector<4x32xf32>
      tpu.vector_store %arg14[%c0_72, %c0_73], %129 {strides = array<i32>} : memref<4x32xf32, #tpu.memory_space<vmem>>, vector<4x32xf32>,
      %cst_74 = arith.constant 0.000000e+00 : f32
      %131 = vector.broadcast %cst_74 : f32 to vector<4x32xf32>
      %c0_75 = arith.constant 0 : index
      %c0_76 = arith.constant 0 : index
      %132 = vector.load %arg15[%c0_75, %c0_76] : memref<4x32xf32, #tpu.memory_space<vmem>>, vector<4x32xf32>
      tpu.vector_store %arg15[%c0_75, %c0_76], %131 {strides = array<i32>} : memref<4x32xf32, #tpu.memory_space<vmem>>, vector<4x32xf32>,
    } else {
    }
    %c0 = arith.constant 0 : index
    %c0_1 = arith.constant 0 : index
    %3 = vector.load %arg1[%c0, %c0_1] : memref<4x1xi32, #tpu.memory_space<vmem>>, vector<4x1xi32>
    %4 = vector.broadcast %arg0 : i32 to vector<4x1xi32>
    %5 = arith.cmpi sgt, %3, %4 : vector<4x1xi32>
    %c0_2 = arith.constant 0 : index
    %c0_3 = arith.constant 0 : index
    %c0_4 = arith.constant 0 : index
    %6 = vector.load %arg2[%c0_2, %c0_3, %c0_4] : memref<1x4x16xf32, #tpu.memory_space<vmem>>, vector<1x4x16xf32>
    %7 = vector.shape_cast %6 : vector<1x4x16xf32> to vector<4x16xf32>
    %c0_5 = arith.constant 0 : index
    %c0_6 = arith.constant 0 : index
    %8 = vector.load %arg12[%c0_5, %c0_6] : memref<4x32xf32, #tpu.memory_space<vmem>>, vector<4x32xf32>
    %c0_7 = arith.constant 0 : index
    %c0_8 = arith.constant 0 : index
    %9 = vector.load %arg13[%c0_7, %c0_8] : memref<4x32xf32, #tpu.memory_space<vmem>>, vector<4x32xf32>
    %c0_9 = arith.constant 0 : index
    %c0_10 = arith.constant 0 : index
    %10 = vector.load %arg4[%c0_9, %c0_10] : memref<16x128xf32, #tpu.memory_space<vmem>>, vector<16x128xf32>
    %c0_11 = arith.constant 0 : index
    %c0_12 = arith.constant 0 : index
    %11 = vector.load %arg5[%c0_11, %c0_12] : memref<32x128xf32, #tpu.memory_space<vmem>>, vector<32x128xf32>
    %c0_13 = arith.constant 0 : index
    %c0_14 = arith.constant 0 : index
    %12 = vector.load %arg6[%c0_13, %c0_14] : memref<1x128xf32, #tpu.memory_space<vmem>>, vector<1x128xf32>
    %cst = arith.constant dense<0.000000e+00> : vector<4x128xf32>
    %13 = tpu.matmul %7, %10, %cst {dimension_numbers = #tpu.dot_dimension_numbers<[1], [0], [0], [1], [0, 0, 1, 1], [], []>} : vector<4x16xf32>, vector<16x128xf32>, vector<4x128xf32> -> vector<4x128xf32>
    %cst_15 = arith.constant dense<0.000000e+00> : vector<4x128xf32>
    %14 = tpu.matmul %8, %11, %cst_15 {dimension_numbers = #tpu.dot_dimension_numbers<[1], [0], [0], [1], [0, 0, 1, 1], [], []>} : vector<4x32xf32>, vector<32x128xf32>, vector<4x128xf32> -> vector<4x128xf32>
    %15 = arith.addf %13, %14 : vector<4x128xf32>
    %16 = vector.broadcast %12 : vector<1x128xf32> to vector<4x128xf32>
    %17 = arith.addf %15, %16 : vector<4x128xf32>
    %18 = vector.extract_strided_slice %17 {offsets = [0, 0], sizes = [4, 32], strides = [1, 1]} : vector<4x128xf32> to vector<4x32xf32>
    %cst_16 = arith.constant 0.000000e+00 : f32
    %19 = vector.broadcast %cst_16 : f32 to vector<4x32xf32>
    %20 = arith.subf %19, %18 : vector<4x32xf32>
    %21 = math.exp %20 : vector<4x32xf32>
    %cst_17 = arith.constant 1.000000e+00 : f32
    %22 = vector.broadcast %cst_17 : f32 to vector<4x32xf32>
    %23 = arith.addf %22, %21 : vector<4x32xf32>
    %cst_18 = arith.constant 1.000000e+00 : f32
    %24 = vector.broadcast %cst_18 : f32 to vector<4x32xf32>
    %25 = arith.divf %24, %23 : vector<4x32xf32>
    %26 = vector.extract_strided_slice %17 {offsets = [0, 32], sizes = [4, 32], strides = [1, 1]} : vector<4x128xf32> to vector<4x32xf32>
    %cst_19 = arith.constant 0.000000e+00 : f32
    %27 = vector.broadcast %cst_19 : f32 to vector<4x32xf32>
    %28 = arith.subf %27, %26 : vector<4x32xf32>
    %29 = math.exp %28 : vector<4x32xf32>
    %cst_20 = arith.constant 1.000000e+00 : f32
    %30 = vector.broadcast %cst_20 : f32 to vector<4x32xf32>
    %31 = arith.addf %30, %29 : vector<4x32xf32>
    %cst_21 = arith.constant 1.000000e+00 : f32
    %32 = vector.broadcast %cst_21 : f32 to vector<4x32xf32>
    %33 = arith.divf %32, %31 : vector<4x32xf32>
    %34 = vector.extract_strided_slice %17 {offsets = [0, 64], sizes = [4, 32], strides = [1, 1]} : vector<4x128xf32> to vector<4x32xf32>
    %35 = math.tanh %34 : vector<4x32xf32>
    %36 = vector.extract_strided_slice %17 {offsets = [0, 96], sizes = [4, 32], strides = [1, 1]} : vector<4x128xf32> to vector<4x32xf32>
    %cst_22 = arith.constant 0.000000e+00 : f32
    %37 = vector.broadcast %cst_22 : f32 to vector<4x32xf32>
    %38 = arith.subf %37, %36 : vector<4x32xf32>
    %39 = math.exp %38 : vector<4x32xf32>
    %cst_23 = arith.constant 1.000000e+00 : f32
    %40 = vector.broadcast %cst_23 : f32 to vector<4x32xf32>
    %41 = arith.addf %40, %39 : vector<4x32xf32>
    %cst_24 = arith.constant 1.000000e+00 : f32
    %42 = vector.broadcast %cst_24 : f32 to vector<4x32xf32>
    %43 = arith.divf %42, %41 : vector<4x32xf32>
    %44 = arith.mulf %33, %9 : vector<4x32xf32>
    %45 = arith.mulf %25, %35 : vector<4x32xf32>
    %46 = arith.addf %44, %45 : vector<4x32xf32>
    %47 = math.tanh %46 : vector<4x32xf32>
    %48 = arith.mulf %43, %47 : vector<4x32xf32>
    %49 = vector.shape_cast %5 : vector<4x1xi1> to vector<4x1xi1>
    %50 = vector.broadcast %49 : vector<4x1xi1> to vector<4x32xi1>
    %51 = arith.select %50, %46, %9 : vector<4x32xi1>, vector<4x32xf32>
    %52 = vector.shape_cast %5 : vector<4x1xi1> to vector<4x1xi1>
    %53 = vector.broadcast %52 : vector<4x1xi1> to vector<4x32xi1>
    %54 = arith.select %53, %48, %8 : vector<4x32xi1>, vector<4x32xf32>
    %cst_25 = arith.constant 0.000000e+00 : f32
    %55 = vector.shape_cast %5 : vector<4x1xi1> to vector<4x1xi1>
    %56 = vector.broadcast %55 : vector<4x1xi1> to vector<4x32xi1>
    %57 = vector.broadcast %cst_25 : f32 to vector<4x32xf32>
    %58 = arith.select %56, %48, %57 : vector<4x32xi1>, vector<4x32xf32>
    %c0_26 = arith.constant 0 : index
    %c0_27 = arith.constant 0 : index
    %59 = vector.load %arg12[%c0_26, %c0_27] : memref<4x32xf32, #tpu.memory_space<vmem>>, vector<4x32xf32>
    tpu.vector_store %arg12[%c0_26, %c0_27], %54 {strides = array<i32>} : memref<4x32xf32, #tpu.memory_space<vmem>>, vector<4x32xf32>,
    %c0_28 = arith.constant 0 : index
    %c0_29 = arith.constant 0 : index
    %60 = vector.load %arg13[%c0_28, %c0_29] : memref<4x32xf32, #tpu.memory_space<vmem>>, vector<4x32xf32>
    tpu.vector_store %arg13[%c0_28, %c0_29], %51 {strides = array<i32>} : memref<4x32xf32, #tpu.memory_space<vmem>>, vector<4x32xf32>,
    %c0_30 = arith.constant 0 : index
    %c0_31 = arith.constant 0 : index
    %c0_32 = arith.constant 0 : index
    %61 = vector.load %arg10[%c0_30, %c0_31, %c0_32] : memref<1x4x32xf32, #tpu.memory_space<vmem>>, vector<1x4x32xf32>
    %62 = vector.shape_cast %61 : vector<1x4x32xf32> to vector<4x32xf32>
    %63 = vector.shape_cast %58 : vector<4x32xf32> to vector<1x4x32xf32>
    tpu.vector_store %arg10[%c0_30, %c0_31, %c0_32], %63 {strides = array<i32>} : memref<1x4x32xf32, #tpu.memory_space<vmem>>, vector<1x4x32xf32>,
    %c11_i32 = arith.constant 11 : i32
    %64 = arith.subi %c11_i32, %arg0 : i32
    %65 = vector.broadcast %64 : i32 to vector<4x1xi32>
    %66 = arith.cmpi sgt, %3, %65 : vector<4x1xi32>
    %c0_33 = arith.constant 0 : index
    %c0_34 = arith.constant 0 : index
    %c0_35 = arith.constant 0 : index
    %67 = vector.load %arg3[%c0_33, %c0_34, %c0_35] : memref<1x4x16xf32, #tpu.memory_space<vmem>>, vector<1x4x16xf32>
    %68 = vector.shape_cast %67 : vector<1x4x16xf32> to vector<4x16xf32>
    %c0_36 = arith.constant 0 : index
    %c0_37 = arith.constant 0 : index
    %69 = vector.load %arg14[%c0_36, %c0_37] : memref<4x32xf32, #tpu.memory_space<vmem>>, vector<4x32xf32>
    %c0_38 = arith.constant 0 : index
    %c0_39 = arith.constant 0 : index
    %70 = vector.load %arg15[%c0_38, %c0_39] : memref<4x32xf32, #tpu.memory_space<vmem>>, vector<4x32xf32>
    %c0_40 = arith.constant 0 : index
    %c0_41 = arith.constant 0 : index
    %71 = vector.load %arg7[%c0_40, %c0_41] : memref<16x128xf32, #tpu.memory_space<vmem>>, vector<16x128xf32>
    %c0_42 = arith.constant 0 : index
    %c0_43 = arith.constant 0 : index
    %72 = vector.load %arg8[%c0_42, %c0_43] : memref<32x128xf32, #tpu.memory_space<vmem>>, vector<32x128xf32>
    %c0_44 = arith.constant 0 : index
    %c0_45 = arith.constant 0 : index
    %73 = vector.load %arg9[%c0_44, %c0_45] : memref<1x128xf32, #tpu.memory_space<vmem>>, vector<1x128xf32>
    %cst_46 = arith.constant dense<0.000000e+00> : vector<4x128xf32>
    %74 = tpu.matmul %68, %71, %cst_46 {dimension_numbers = #tpu.dot_dimension_numbers<[1], [0], [0], [1], [0, 0, 1, 1], [], []>} : vector<4x16xf32>, vector<16x128xf32>, vector<4x128xf32> -> vector<4x128xf32>
    %cst_47 = arith.constant dense<0.000000e+00> : vector<4x128xf32>
    %75 = tpu.matmul %69, %72, %cst_47 {dimension_numbers = #tpu.dot_dimension_numbers<[1], [0], [0], [1], [0, 0, 1, 1], [], []>} : vector<4x32xf32>, vector<32x128xf32>, vector<4x128xf32> -> vector<4x128xf32>
    %76 = arith.addf %74, %75 : vector<4x128xf32>
    %77 = vector.broadcast %73 : vector<1x128xf32> to vector<4x128xf32>
    %78 = arith.addf %76, %77 : vector<4x128xf32>
    %79 = vector.extract_strided_slice %78 {offsets = [0, 0], sizes = [4, 32], strides = [1, 1]} : vector<4x128xf32> to vector<4x32xf32>
    %cst_48 = arith.constant 0.000000e+00 : f32
    %80 = vector.broadcast %cst_48 : f32 to vector<4x32xf32>
    %81 = arith.subf %80, %79 : vector<4x32xf32>
    %82 = math.exp %81 : vector<4x32xf32>
    %cst_49 = arith.constant 1.000000e+00 : f32
    %83 = vector.broadcast %cst_49 : f32 to vector<4x32xf32>
    %84 = arith.addf %83, %82 : vector<4x32xf32>
    %cst_50 = arith.constant 1.000000e+00 : f32
    %85 = vector.broadcast %cst_50 : f32 to vector<4x32xf32>
    %86 = arith.divf %85, %84 : vector<4x32xf32>
    %87 = vector.extract_strided_slice %78 {offsets = [0, 32], sizes = [4, 32], strides = [1, 1]} : vector<4x128xf32> to vector<4x32xf32>
    %cst_51 = arith.constant 0.000000e+00 : f32
    %88 = vector.broadcast %cst_51 : f32 to vector<4x32xf32>
    %89 = arith.subf %88, %87 : vector<4x32xf32>
    %90 = math.exp %89 : vector<4x32xf32>
    %cst_52 = arith.constant 1.000000e+00 : f32
    %91 = vector.broadcast %cst_52 : f32 to vector<4x32xf32>
    %92 = arith.addf %91, %90 : vector<4x32xf32>
    %cst_53 = arith.constant 1.000000e+00 : f32
    %93 = vector.broadcast %cst_53 : f32 to vector<4x32xf32>
    %94 = arith.divf %93, %92 : vector<4x32xf32>
    %95 = vector.extract_strided_slice %78 {offsets = [0, 64], sizes = [4, 32], strides = [1, 1]} : vector<4x128xf32> to vector<4x32xf32>
    %96 = math.tanh %95 : vector<4x32xf32>
    %97 = vector.extract_strided_slice %78 {offsets = [0, 96], sizes = [4, 32], strides = [1, 1]} : vector<4x128xf32> to vector<4x32xf32>
    %cst_54 = arith.constant 0.000000e+00 : f32
    %98 = vector.broadcast %cst_54 : f32 to vector<4x32xf32>
    %99 = arith.subf %98, %97 : vector<4x32xf32>
    %100 = math.exp %99 : vector<4x32xf32>
    %cst_55 = arith.constant 1.000000e+00 : f32
    %101 = vector.broadcast %cst_55 : f32 to vector<4x32xf32>
    %102 = arith.addf %101, %100 : vector<4x32xf32>
    %cst_56 = arith.constant 1.000000e+00 : f32
    %103 = vector.broadcast %cst_56 : f32 to vector<4x32xf32>
    %104 = arith.divf %103, %102 : vector<4x32xf32>
    %105 = arith.mulf %94, %70 : vector<4x32xf32>
    %106 = arith.mulf %86, %96 : vector<4x32xf32>
    %107 = arith.addf %105, %106 : vector<4x32xf32>
    %108 = math.tanh %107 : vector<4x32xf32>
    %109 = arith.mulf %104, %108 : vector<4x32xf32>
    %110 = vector.shape_cast %66 : vector<4x1xi1> to vector<4x1xi1>
    %111 = vector.broadcast %110 : vector<4x1xi1> to vector<4x32xi1>
    %112 = arith.select %111, %107, %70 : vector<4x32xi1>, vector<4x32xf32>
    %113 = vector.shape_cast %66 : vector<4x1xi1> to vector<4x1xi1>
    %114 = vector.broadcast %113 : vector<4x1xi1> to vector<4x32xi1>
    %115 = arith.select %114, %109, %69 : vector<4x32xi1>, vector<4x32xf32>
    %cst_57 = arith.constant 0.000000e+00 : f32
    %116 = vector.shape_cast %66 : vector<4x1xi1> to vector<4x1xi1>
    %117 = vector.broadcast %116 : vector<4x1xi1> to vector<4x32xi1>
    %118 = vector.broadcast %cst_57 : f32 to vector<4x32xf32>
    %119 = arith.select %117, %109, %118 : vector<4x32xi1>, vector<4x32xf32>
    %c0_58 = arith.constant 0 : index
    %c0_59 = arith.constant 0 : index
    %120 = vector.load %arg14[%c0_58, %c0_59] : memref<4x32xf32, #tpu.memory_space<vmem>>, vector<4x32xf32>
    tpu.vector_store %arg14[%c0_58, %c0_59], %115 {strides = array<i32>} : memref<4x32xf32, #tpu.memory_space<vmem>>, vector<4x32xf32>,
    %c0_60 = arith.constant 0 : index
    %c0_61 = arith.constant 0 : index
    %121 = vector.load %arg15[%c0_60, %c0_61] : memref<4x32xf32, #tpu.memory_space<vmem>>, vector<4x32xf32>
    tpu.vector_store %arg15[%c0_60, %c0_61], %112 {strides = array<i32>} : memref<4x32xf32, #tpu.memory_space<vmem>>, vector<4x32xf32>,
    %c0_62 = arith.constant 0 : index
    %c0_63 = arith.constant 0 : index
    %c0_64 = arith.constant 0 : index
    %122 = vector.load %arg11[%c0_62, %c0_63, %c0_64] : memref<1x4x32xf32, #tpu.memory_space<vmem>>, vector<1x4x32xf32>
    %123 = vector.shape_cast %122 : vector<1x4x32xf32> to vector<4x32xf32>
    %124 = vector.shape_cast %119 : vector<4x32xf32> to vector<1x4x32xf32>
    tpu.vector_store %arg11[%c0_62, %c0_63, %c0_64], %124 {strides = array<i32>} : memref<1x4x32xf32, #tpu.memory_space<vmem>>, vector<1x4x32xf32>,
    return
  }
  func.func @transform_0(%arg0: i32) -> (i32, i32) {
    %c0_i32 = arith.constant 0 : i32
    %c0_i32_0 = arith.constant 0 : i32
    %c0_i32_1 = arith.constant 0 : i32
    return %c0_i32, %c0_i32_0 : i32, i32
  }
  func.func @transform_1(%arg0: i32) -> (i32, i32, i32) {
    %c0_i32 = arith.constant 0 : i32
    %c0_i32_0 = arith.constant 0 : i32
    %c0_i32_1 = arith.constant 0 : i32
    return %arg0, %c0_i32, %c0_i32_0 : i32, i32, i32
  }
  func.func @transform_2(%arg0: i32) -> (i32, i32, i32) {
    %c11_i32 = arith.constant 11 : i32
    %0 = arith.subi %c11_i32, %arg0 : i32
    %c0_i32 = arith.constant 0 : i32
    %c0_i32_0 = arith.constant 0 : i32
    %c0_i32_1 = arith.constant 0 : i32
    return %0, %c0_i32, %c0_i32_0 : i32, i32, i32
  }
  func.func @transform_3(%arg0: i32) -> (i32, i32) {
    %c0_i32 = arith.constant 0 : i32
    %c0_i32_0 = arith.constant 0 : i32
    %c0_i32_1 = arith.constant 0 : i32
    return %c0_i32, %c0_i32_0 : i32, i32
  }
  func.func @transform_4(%arg0: i32) -> (i32, i32) {
    %c0_i32 = arith.constant 0 : i32
    %c0_i32_0 = arith.constant 0 : i32
    %c0_i32_1 = arith.constant 0 : i32
    return %c0_i32, %c0_i32_0 : i32, i32
  }
  func.func @transform_5(%arg0: i32) -> (i32, i32) {
    %c0_i32 = arith.constant 0 : i32
    %c0_i32_0 = arith.constant 0 : i32
    %c0_i32_1 = arith.constant 0 : i32
    return %c0_i32, %c0_i32_0 : i32, i32
  }
  func.func @transform_6(%arg0: i32) -> (i32, i32) {
    %c0_i32 = arith.constant 0 : i32
    %c0_i32_0 = arith.constant 0 : i32
    %c0_i32_1 = arith.constant 0 : i32
    return %c0_i32, %c0_i32_0 : i32, i32
  }
  func.func @transform_7(%arg0: i32) -> (i32, i32) {
    %c0_i32 = arith.constant 0 : i32
    %c0_i32_0 = arith.constant 0 : i32
    %c0_i32_1 = arith.constant 0 : i32
    return %c0_i32, %c0_i32_0 : i32, i32
  }
  func.func @transform_8(%arg0: i32) -> (i32, i32) {
    %c0_i32 = arith.constant 0 : i32
    %c0_i32_0 = arith.constant 0 : i32
    %c0_i32_1 = arith.constant 0 : i32
    return %c0_i32, %c0_i32_0 : i32, i32
  }
  func.func @transform_9(%arg0: i32) -> (i32, i32, i32) {
    %c0_i32 = arith.constant 0 : i32
    %c0_i32_0 = arith.constant 0 : i32
    %c0_i32_1 = arith.constant 0 : i32
    return %arg0, %c0_i32, %c0_i32_0 : i32, i32, i32
  }
  func.func @transform_10(%arg0: i32) -> (i32, i32, i32) {
    %c11_i32 = arith.constant 11 : i32
    %0 = arith.subi %c11_i32, %arg0 : i32
    %c0_i32 = arith.constant 0 : i32
    %c0_i32_0 = arith.constant 0 : i32
    %c0_i32_1 = arith.constant 0 : i32
    return %0, %c0_i32, %c0_i32_0 : i32, i32, i32
  }
}

module attributes {stable_mosaic.version = 11 : i64} {
  func.func @_lstm_bi_kernel(%arg0: i32, %arg1: memref<4x1xi32, #tpu.memory_space<vmem>>, %arg2: memref<1x4x64xf32, #tpu.memory_space<vmem>>, %arg3: memref<1x4x64xf32, #tpu.memory_space<vmem>>, %arg4: memref<64x128xf32, #tpu.memory_space<vmem>>, %arg5: memref<32x128xf32, #tpu.memory_space<vmem>>, %arg6: memref<1x128xf32, #tpu.memory_space<vmem>>, %arg7: memref<64x128xf32, #tpu.memory_space<vmem>>, %arg8: memref<32x128xf32, #tpu.memory_space<vmem>>, %arg9: memref<1x128xf32, #tpu.memory_space<vmem>>, %arg10: memref<1x4x32xf32, #tpu.memory_space<vmem>>, %arg11: memref<1x4x32xf32, #tpu.memory_space<vmem>>, %arg12: memref<4x32xf32, #tpu.memory_space<vmem>>, %arg13: memref<4x32xf32, #tpu.memory_space<vmem>>, %arg14: memref<4x32xf32, #tpu.memory_space<vmem>>, %arg15: memref<4x32xf32, #tpu.memory_space<vmem>>) attributes {dimension_semantics = [#tpu.dimension_semantics<arbitrary>], iteration_bounds = array<i64: 12>, scalar_prefetch = 0 : i64, scratch_operands = 4 : i64, tpu.core_type = #tpu.core_type<tc>, window_params = [{pipeline_mode = #tpu.pipeline_mode<synchronous>, transform_indices = @transform_0, window_bounds = array<i64: 4, 1>}, {transform_indices = @transform_1, window_bounds = array<i64: 1, 4, 64>}, {transform_indices = @transform_2, window_bounds = array<i64: 1, 4, 64>}, {pipeline_mode = #tpu.pipeline_mode<synchronous>, transform_indices = @transform_3, window_bounds = array<i64: 64, 128>}, {pipeline_mode = #tpu.pipeline_mode<synchronous>, transform_indices = @transform_4, window_bounds = array<i64: 32, 128>}, {pipeline_mode = #tpu.pipeline_mode<synchronous>, transform_indices = @transform_5, window_bounds = array<i64: 1, 128>}, {pipeline_mode = #tpu.pipeline_mode<synchronous>, transform_indices = @transform_6, window_bounds = array<i64: 64, 128>}, {pipeline_mode = #tpu.pipeline_mode<synchronous>, transform_indices = @transform_7, window_bounds = array<i64: 32, 128>}, {pipeline_mode = #tpu.pipeline_mode<synchronous>, transform_indices = @transform_8, window_bounds = array<i64: 1, 128>}, {transform_indices = @transform_9, window_bounds = array<i64: 1, 4, 32>}, {transform_indices = @transform_10, window_bounds = array<i64: 1, 4, 32>}]} {
    %c0_i32 = arith.constant 0 : i32
    %0 = arith.cmpi eq, %arg0, %c0_i32 : i32
    %1 = arith.extui %0 : i1 to i32
    %c0_i32_0 = arith.constant 0 : i32
    %2 = arith.cmpi ne, %1, %c0_i32_0 : i32
    scf.if %2 {
      %cst_65 = arith.constant 0.000000e+00 : f32
      %125 = vector.broadcast %cst_65 : f32 to vector<4x32xf32>
      %c0_66 = arith.constant 0 : index
      %c0_67 = arith.constant 0 : index
      %126 = vector.load %arg12[%c0_66, %c0_67] : memref<4x32xf32, #tpu.memory_space<vmem>>, vector<4x32xf32>
      tpu.vector_store %arg12[%c0_66, %c0_67], %125 {strides = array<i32>} : memref<4x32xf32, #tpu.memory_space<vmem>>, vector<4x32xf32>,
      %cst_68 = arith.constant 0.000000e+00 : f32
      %127 = vector.broadcast %cst_68 : f32 to vector<4x32xf32>
      %c0_69 = arith.constant 0 : index
      %c0_70 = arith.constant 0 : index
      %128 = vector.load %arg13[%c0_69, %c0_70] : memref<4x32xf32, #tpu.memory_space<vmem>>, vector<4x32xf32>
      tpu.vector_store %arg13[%c0_69, %c0_70], %127 {strides = array<i32>} : memref<4x32xf32, #tpu.memory_space<vmem>>, vector<4x32xf32>,
      %cst_71 = arith.constant 0.000000e+00 : f32
      %129 = vector.broadcast %cst_71 : f32 to vector<4x32xf32>
      %c0_72 = arith.constant 0 : index
      %c0_73 = arith.constant 0 : index
      %130 = vector.load %arg14[%c0_72, %c0_73] : memref<4x32xf32, #tpu.memory_space<vmem>>, vector<4x32xf32>
      tpu.vector_store %arg14[%c0_72, %c0_73], %129 {strides = array<i32>} : memref<4x32xf32, #tpu.memory_space<vmem>>, vector<4x32xf32>,
      %cst_74 = arith.constant 0.000000e+00 : f32
      %131 = vector.broadcast %cst_74 : f32 to vector<4x32xf32>
      %c0_75 = arith.constant 0 : index
      %c0_76 = arith.constant 0 : index
      %132 = vector.load %arg15[%c0_75, %c0_76] : memref<4x32xf32, #tpu.memory_space<vmem>>, vector<4x32xf32>
      tpu.vector_store %arg15[%c0_75, %c0_76], %131 {strides = array<i32>} : memref<4x32xf32, #tpu.memory_space<vmem>>, vector<4x32xf32>,
    } else {
    }
    %c0 = arith.constant 0 : index
    %c0_1 = arith.constant 0 : index
    %3 = vector.load %arg1[%c0, %c0_1] : memref<4x1xi32, #tpu.memory_space<vmem>>, vector<4x1xi32>
    %4 = vector.broadcast %arg0 : i32 to vector<4x1xi32>
    %5 = arith.cmpi sgt, %3, %4 : vector<4x1xi32>
    %c0_2 = arith.constant 0 : index
    %c0_3 = arith.constant 0 : index
    %c0_4 = arith.constant 0 : index
    %6 = vector.load %arg2[%c0_2, %c0_3, %c0_4] : memref<1x4x64xf32, #tpu.memory_space<vmem>>, vector<1x4x64xf32>
    %7 = vector.shape_cast %6 : vector<1x4x64xf32> to vector<4x64xf32>
    %c0_5 = arith.constant 0 : index
    %c0_6 = arith.constant 0 : index
    %8 = vector.load %arg12[%c0_5, %c0_6] : memref<4x32xf32, #tpu.memory_space<vmem>>, vector<4x32xf32>
    %c0_7 = arith.constant 0 : index
    %c0_8 = arith.constant 0 : index
    %9 = vector.load %arg13[%c0_7, %c0_8] : memref<4x32xf32, #tpu.memory_space<vmem>>, vector<4x32xf32>
    %c0_9 = arith.constant 0 : index
    %c0_10 = arith.constant 0 : index
    %10 = vector.load %arg4[%c0_9, %c0_10] : memref<64x128xf32, #tpu.memory_space<vmem>>, vector<64x128xf32>
    %c0_11 = arith.constant 0 : index
    %c0_12 = arith.constant 0 : index
    %11 = vector.load %arg5[%c0_11, %c0_12] : memref<32x128xf32, #tpu.memory_space<vmem>>, vector<32x128xf32>
    %c0_13 = arith.constant 0 : index
    %c0_14 = arith.constant 0 : index
    %12 = vector.load %arg6[%c0_13, %c0_14] : memref<1x128xf32, #tpu.memory_space<vmem>>, vector<1x128xf32>
    %cst = arith.constant dense<0.000000e+00> : vector<4x128xf32>
    %13 = tpu.matmul %7, %10, %cst {dimension_numbers = #tpu.dot_dimension_numbers<[1], [0], [0], [1], [0, 0, 1, 1], [], []>} : vector<4x64xf32>, vector<64x128xf32>, vector<4x128xf32> -> vector<4x128xf32>
    %cst_15 = arith.constant dense<0.000000e+00> : vector<4x128xf32>
    %14 = tpu.matmul %8, %11, %cst_15 {dimension_numbers = #tpu.dot_dimension_numbers<[1], [0], [0], [1], [0, 0, 1, 1], [], []>} : vector<4x32xf32>, vector<32x128xf32>, vector<4x128xf32> -> vector<4x128xf32>
    %15 = arith.addf %13, %14 : vector<4x128xf32>
    %16 = vector.broadcast %12 : vector<1x128xf32> to vector<4x128xf32>
    %17 = arith.addf %15, %16 : vector<4x128xf32>
    %18 = vector.extract_strided_slice %17 {offsets = [0, 0], sizes = [4, 32], strides = [1, 1]} : vector<4x128xf32> to vector<4x32xf32>
    %cst_16 = arith.constant 0.000000e+00 : f32
    %19 = vector.broadcast %cst_16 : f32 to vector<4x32xf32>
    %20 = arith.subf %19, %18 : vector<4x32xf32>
    %21 = math.exp %20 : vector<4x32xf32>
    %cst_17 = arith.constant 1.000000e+00 : f32
    %22 = vector.broadcast %cst_17 : f32 to vector<4x32xf32>
    %23 = arith.addf %22, %21 : vector<4x32xf32>
    %cst_18 = arith.constant 1.000000e+00 : f32
    %24 = vector.broadcast %cst_18 : f32 to vector<4x32xf32>
    %25 = arith.divf %24, %23 : vector<4x32xf32>
    %26 = vector.extract_strided_slice %17 {offsets = [0, 32], sizes = [4, 32], strides = [1, 1]} : vector<4x128xf32> to vector<4x32xf32>
    %cst_19 = arith.constant 0.000000e+00 : f32
    %27 = vector.broadcast %cst_19 : f32 to vector<4x32xf32>
    %28 = arith.subf %27, %26 : vector<4x32xf32>
    %29 = math.exp %28 : vector<4x32xf32>
    %cst_20 = arith.constant 1.000000e+00 : f32
    %30 = vector.broadcast %cst_20 : f32 to vector<4x32xf32>
    %31 = arith.addf %30, %29 : vector<4x32xf32>
    %cst_21 = arith.constant 1.000000e+00 : f32
    %32 = vector.broadcast %cst_21 : f32 to vector<4x32xf32>
    %33 = arith.divf %32, %31 : vector<4x32xf32>
    %34 = vector.extract_strided_slice %17 {offsets = [0, 64], sizes = [4, 32], strides = [1, 1]} : vector<4x128xf32> to vector<4x32xf32>
    %35 = math.tanh %34 : vector<4x32xf32>
    %36 = vector.extract_strided_slice %17 {offsets = [0, 96], sizes = [4, 32], strides = [1, 1]} : vector<4x128xf32> to vector<4x32xf32>
    %cst_22 = arith.constant 0.000000e+00 : f32
    %37 = vector.broadcast %cst_22 : f32 to vector<4x32xf32>
    %38 = arith.subf %37, %36 : vector<4x32xf32>
    %39 = math.exp %38 : vector<4x32xf32>
    %cst_23 = arith.constant 1.000000e+00 : f32
    %40 = vector.broadcast %cst_23 : f32 to vector<4x32xf32>
    %41 = arith.addf %40, %39 : vector<4x32xf32>
    %cst_24 = arith.constant 1.000000e+00 : f32
    %42 = vector.broadcast %cst_24 : f32 to vector<4x32xf32>
    %43 = arith.divf %42, %41 : vector<4x32xf32>
    %44 = arith.mulf %33, %9 : vector<4x32xf32>
    %45 = arith.mulf %25, %35 : vector<4x32xf32>
    %46 = arith.addf %44, %45 : vector<4x32xf32>
    %47 = math.tanh %46 : vector<4x32xf32>
    %48 = arith.mulf %43, %47 : vector<4x32xf32>
    %49 = vector.shape_cast %5 : vector<4x1xi1> to vector<4x1xi1>
    %50 = vector.broadcast %49 : vector<4x1xi1> to vector<4x32xi1>
    %51 = arith.select %50, %46, %9 : vector<4x32xi1>, vector<4x32xf32>
    %52 = vector.shape_cast %5 : vector<4x1xi1> to vector<4x1xi1>
    %53 = vector.broadcast %52 : vector<4x1xi1> to vector<4x32xi1>
    %54 = arith.select %53, %48, %8 : vector<4x32xi1>, vector<4x32xf32>
    %cst_25 = arith.constant 0.000000e+00 : f32
    %55 = vector.shape_cast %5 : vector<4x1xi1> to vector<4x1xi1>
    %56 = vector.broadcast %55 : vector<4x1xi1> to vector<4x32xi1>
    %57 = vector.broadcast %cst_25 : f32 to vector<4x32xf32>
    %58 = arith.select %56, %48, %57 : vector<4x32xi1>, vector<4x32xf32>
    %c0_26 = arith.constant 0 : index
    %c0_27 = arith.constant 0 : index
    %59 = vector.load %arg12[%c0_26, %c0_27] : memref<4x32xf32, #tpu.memory_space<vmem>>, vector<4x32xf32>
    tpu.vector_store %arg12[%c0_26, %c0_27], %54 {strides = array<i32>} : memref<4x32xf32, #tpu.memory_space<vmem>>, vector<4x32xf32>,
    %c0_28 = arith.constant 0 : index
    %c0_29 = arith.constant 0 : index
    %60 = vector.load %arg13[%c0_28, %c0_29] : memref<4x32xf32, #tpu.memory_space<vmem>>, vector<4x32xf32>
    tpu.vector_store %arg13[%c0_28, %c0_29], %51 {strides = array<i32>} : memref<4x32xf32, #tpu.memory_space<vmem>>, vector<4x32xf32>,
    %c0_30 = arith.constant 0 : index
    %c0_31 = arith.constant 0 : index
    %c0_32 = arith.constant 0 : index
    %61 = vector.load %arg10[%c0_30, %c0_31, %c0_32] : memref<1x4x32xf32, #tpu.memory_space<vmem>>, vector<1x4x32xf32>
    %62 = vector.shape_cast %61 : vector<1x4x32xf32> to vector<4x32xf32>
    %63 = vector.shape_cast %58 : vector<4x32xf32> to vector<1x4x32xf32>
    tpu.vector_store %arg10[%c0_30, %c0_31, %c0_32], %63 {strides = array<i32>} : memref<1x4x32xf32, #tpu.memory_space<vmem>>, vector<1x4x32xf32>,
    %c11_i32 = arith.constant 11 : i32
    %64 = arith.subi %c11_i32, %arg0 : i32
    %65 = vector.broadcast %64 : i32 to vector<4x1xi32>
    %66 = arith.cmpi sgt, %3, %65 : vector<4x1xi32>
    %c0_33 = arith.constant 0 : index
    %c0_34 = arith.constant 0 : index
    %c0_35 = arith.constant 0 : index
    %67 = vector.load %arg3[%c0_33, %c0_34, %c0_35] : memref<1x4x64xf32, #tpu.memory_space<vmem>>, vector<1x4x64xf32>
    %68 = vector.shape_cast %67 : vector<1x4x64xf32> to vector<4x64xf32>
    %c0_36 = arith.constant 0 : index
    %c0_37 = arith.constant 0 : index
    %69 = vector.load %arg14[%c0_36, %c0_37] : memref<4x32xf32, #tpu.memory_space<vmem>>, vector<4x32xf32>
    %c0_38 = arith.constant 0 : index
    %c0_39 = arith.constant 0 : index
    %70 = vector.load %arg15[%c0_38, %c0_39] : memref<4x32xf32, #tpu.memory_space<vmem>>, vector<4x32xf32>
    %c0_40 = arith.constant 0 : index
    %c0_41 = arith.constant 0 : index
    %71 = vector.load %arg7[%c0_40, %c0_41] : memref<64x128xf32, #tpu.memory_space<vmem>>, vector<64x128xf32>
    %c0_42 = arith.constant 0 : index
    %c0_43 = arith.constant 0 : index
    %72 = vector.load %arg8[%c0_42, %c0_43] : memref<32x128xf32, #tpu.memory_space<vmem>>, vector<32x128xf32>
    %c0_44 = arith.constant 0 : index
    %c0_45 = arith.constant 0 : index
    %73 = vector.load %arg9[%c0_44, %c0_45] : memref<1x128xf32, #tpu.memory_space<vmem>>, vector<1x128xf32>
    %cst_46 = arith.constant dense<0.000000e+00> : vector<4x128xf32>
    %74 = tpu.matmul %68, %71, %cst_46 {dimension_numbers = #tpu.dot_dimension_numbers<[1], [0], [0], [1], [0, 0, 1, 1], [], []>} : vector<4x64xf32>, vector<64x128xf32>, vector<4x128xf32> -> vector<4x128xf32>
    %cst_47 = arith.constant dense<0.000000e+00> : vector<4x128xf32>
    %75 = tpu.matmul %69, %72, %cst_47 {dimension_numbers = #tpu.dot_dimension_numbers<[1], [0], [0], [1], [0, 0, 1, 1], [], []>} : vector<4x32xf32>, vector<32x128xf32>, vector<4x128xf32> -> vector<4x128xf32>
    %76 = arith.addf %74, %75 : vector<4x128xf32>
    %77 = vector.broadcast %73 : vector<1x128xf32> to vector<4x128xf32>
    %78 = arith.addf %76, %77 : vector<4x128xf32>
    %79 = vector.extract_strided_slice %78 {offsets = [0, 0], sizes = [4, 32], strides = [1, 1]} : vector<4x128xf32> to vector<4x32xf32>
    %cst_48 = arith.constant 0.000000e+00 : f32
    %80 = vector.broadcast %cst_48 : f32 to vector<4x32xf32>
    %81 = arith.subf %80, %79 : vector<4x32xf32>
    %82 = math.exp %81 : vector<4x32xf32>
    %cst_49 = arith.constant 1.000000e+00 : f32
    %83 = vector.broadcast %cst_49 : f32 to vector<4x32xf32>
    %84 = arith.addf %83, %82 : vector<4x32xf32>
    %cst_50 = arith.constant 1.000000e+00 : f32
    %85 = vector.broadcast %cst_50 : f32 to vector<4x32xf32>
    %86 = arith.divf %85, %84 : vector<4x32xf32>
    %87 = vector.extract_strided_slice %78 {offsets = [0, 32], sizes = [4, 32], strides = [1, 1]} : vector<4x128xf32> to vector<4x32xf32>
    %cst_51 = arith.constant 0.000000e+00 : f32
    %88 = vector.broadcast %cst_51 : f32 to vector<4x32xf32>
    %89 = arith.subf %88, %87 : vector<4x32xf32>
    %90 = math.exp %89 : vector<4x32xf32>
    %cst_52 = arith.constant 1.000000e+00 : f32
    %91 = vector.broadcast %cst_52 : f32 to vector<4x32xf32>
    %92 = arith.addf %91, %90 : vector<4x32xf32>
    %cst_53 = arith.constant 1.000000e+00 : f32
    %93 = vector.broadcast %cst_53 : f32 to vector<4x32xf32>
    %94 = arith.divf %93, %92 : vector<4x32xf32>
    %95 = vector.extract_strided_slice %78 {offsets = [0, 64], sizes = [4, 32], strides = [1, 1]} : vector<4x128xf32> to vector<4x32xf32>
    %96 = math.tanh %95 : vector<4x32xf32>
    %97 = vector.extract_strided_slice %78 {offsets = [0, 96], sizes = [4, 32], strides = [1, 1]} : vector<4x128xf32> to vector<4x32xf32>
    %cst_54 = arith.constant 0.000000e+00 : f32
    %98 = vector.broadcast %cst_54 : f32 to vector<4x32xf32>
    %99 = arith.subf %98, %97 : vector<4x32xf32>
    %100 = math.exp %99 : vector<4x32xf32>
    %cst_55 = arith.constant 1.000000e+00 : f32
    %101 = vector.broadcast %cst_55 : f32 to vector<4x32xf32>
    %102 = arith.addf %101, %100 : vector<4x32xf32>
    %cst_56 = arith.constant 1.000000e+00 : f32
    %103 = vector.broadcast %cst_56 : f32 to vector<4x32xf32>
    %104 = arith.divf %103, %102 : vector<4x32xf32>
    %105 = arith.mulf %94, %70 : vector<4x32xf32>
    %106 = arith.mulf %86, %96 : vector<4x32xf32>
    %107 = arith.addf %105, %106 : vector<4x32xf32>
    %108 = math.tanh %107 : vector<4x32xf32>
    %109 = arith.mulf %104, %108 : vector<4x32xf32>
    %110 = vector.shape_cast %66 : vector<4x1xi1> to vector<4x1xi1>
    %111 = vector.broadcast %110 : vector<4x1xi1> to vector<4x32xi1>
    %112 = arith.select %111, %107, %70 : vector<4x32xi1>, vector<4x32xf32>
    %113 = vector.shape_cast %66 : vector<4x1xi1> to vector<4x1xi1>
    %114 = vector.broadcast %113 : vector<4x1xi1> to vector<4x32xi1>
    %115 = arith.select %114, %109, %69 : vector<4x32xi1>, vector<4x32xf32>
    %cst_57 = arith.constant 0.000000e+00 : f32
    %116 = vector.shape_cast %66 : vector<4x1xi1> to vector<4x1xi1>
    %117 = vector.broadcast %116 : vector<4x1xi1> to vector<4x32xi1>
    %118 = vector.broadcast %cst_57 : f32 to vector<4x32xf32>
    %119 = arith.select %117, %109, %118 : vector<4x32xi1>, vector<4x32xf32>
    %c0_58 = arith.constant 0 : index
    %c0_59 = arith.constant 0 : index
    %120 = vector.load %arg14[%c0_58, %c0_59] : memref<4x32xf32, #tpu.memory_space<vmem>>, vector<4x32xf32>
    tpu.vector_store %arg14[%c0_58, %c0_59], %115 {strides = array<i32>} : memref<4x32xf32, #tpu.memory_space<vmem>>, vector<4x32xf32>,
    %c0_60 = arith.constant 0 : index
    %c0_61 = arith.constant 0 : index
    %121 = vector.load %arg15[%c0_60, %c0_61] : memref<4x32xf32, #tpu.memory_space<vmem>>, vector<4x32xf32>
    tpu.vector_store %arg15[%c0_60, %c0_61], %112 {strides = array<i32>} : memref<4x32xf32, #tpu.memory_space<vmem>>, vector<4x32xf32>,
    %c0_62 = arith.constant 0 : index
    %c0_63 = arith.constant 0 : index
    %c0_64 = arith.constant 0 : index
    %122 = vector.load %arg11[%c0_62, %c0_63, %c0_64] : memref<1x4x32xf32, #tpu.memory_space<vmem>>, vector<1x4x32xf32>
    %123 = vector.shape_cast %122 : vector<1x4x32xf32> to vector<4x32xf32>
    %124 = vector.shape_cast %119 : vector<4x32xf32> to vector<1x4x32xf32>
    tpu.vector_store %arg11[%c0_62, %c0_63, %c0_64], %124 {strides = array<i32>} : memref<1x4x32xf32, #tpu.memory_space<vmem>>, vector<1x4x32xf32>,
    return
  }
  func.func @transform_0(%arg0: i32) -> (i32, i32) {
    %c0_i32 = arith.constant 0 : i32
    %c0_i32_0 = arith.constant 0 : i32
    %c0_i32_1 = arith.constant 0 : i32
    return %c0_i32, %c0_i32_0 : i32, i32
  }
  func.func @transform_1(%arg0: i32) -> (i32, i32, i32) {
    %c0_i32 = arith.constant 0 : i32
    %c0_i32_0 = arith.constant 0 : i32
    %c0_i32_1 = arith.constant 0 : i32
    return %arg0, %c0_i32, %c0_i32_0 : i32, i32, i32
  }
  func.func @transform_2(%arg0: i32) -> (i32, i32, i32) {
    %c11_i32 = arith.constant 11 : i32
    %0 = arith.subi %c11_i32, %arg0 : i32
    %c0_i32 = arith.constant 0 : i32
    %c0_i32_0 = arith.constant 0 : i32
    %c0_i32_1 = arith.constant 0 : i32
    return %0, %c0_i32, %c0_i32_0 : i32, i32, i32
  }
  func.func @transform_3(%arg0: i32) -> (i32, i32) {
    %c0_i32 = arith.constant 0 : i32
    %c0_i32_0 = arith.constant 0 : i32
    %c0_i32_1 = arith.constant 0 : i32
    return %c0_i32, %c0_i32_0 : i32, i32
  }
  func.func @transform_4(%arg0: i32) -> (i32, i32) {
    %c0_i32 = arith.constant 0 : i32
    %c0_i32_0 = arith.constant 0 : i32
    %c0_i32_1 = arith.constant 0 : i32
    return %c0_i32, %c0_i32_0 : i32, i32
  }
  func.func @transform_5(%arg0: i32) -> (i32, i32) {
    %c0_i32 = arith.constant 0 : i32
    %c0_i32_0 = arith.constant 0 : i32
    %c0_i32_1 = arith.constant 0 : i32
    return %c0_i32, %c0_i32_0 : i32, i32
  }
  func.func @transform_6(%arg0: i32) -> (i32, i32) {
    %c0_i32 = arith.constant 0 : i32
    %c0_i32_0 = arith.constant 0 : i32
    %c0_i32_1 = arith.constant 0 : i32
    return %c0_i32, %c0_i32_0 : i32, i32
  }
  func.func @transform_7(%arg0: i32) -> (i32, i32) {
    %c0_i32 = arith.constant 0 : i32
    %c0_i32_0 = arith.constant 0 : i32
    %c0_i32_1 = arith.constant 0 : i32
    return %c0_i32, %c0_i32_0 : i32, i32
  }
  func.func @transform_8(%arg0: i32) -> (i32, i32) {
    %c0_i32 = arith.constant 0 : i32
    %c0_i32_0 = arith.constant 0 : i32
    %c0_i32_1 = arith.constant 0 : i32
    return %c0_i32, %c0_i32_0 : i32, i32
  }
  func.func @transform_9(%arg0: i32) -> (i32, i32, i32) {
    %c0_i32 = arith.constant 0 : i32
    %c0_i32_0 = arith.constant 0 : i32
    %c0_i32_1 = arith.constant 0 : i32
    return %arg0, %c0_i32, %c0_i32_0 : i32, i32, i32
  }
  func.func @transform_10(%arg0: i32) -> (i32, i32, i32) {
    %c11_i32 = arith.constant 11 : i32
    %0 = arith.subi %c11_i32, %arg0 : i32
    %c0_i32 = arith.constant 0 : i32
    %c0_i32_0 = arith.constant 0 : i32
    %c0_i32_1 = arith.constant 0 : i32
    return %0, %c0_i32, %c0_i32_0 : i32, i32, i32
  }
}

</mosaic_0001>

<llo_original>
// kernel: rnn_forward.2
$region0: #{rnn_forward.2}
  #allocation0 [shape = 'u32[]', space=smem, size = 0x4, offset = 0x4, fixed_abs, tag = 'smem constant byte address 0x4 - core index']
  #allocation1 [shape = 'u32[144,128]{1,0:T(1,128)}', space=vmem, size = 0x12000, scoped, tag = 'internal scratch']
  #allocation2 [shape = 'f32[4,32]{1,0:T(4,128)}', space=vmem, size = 0x800, scoped, tag = 'scratch operand']
  #allocation3 [shape = 'f32[4,32]{1,0:T(4,128)}', space=vmem, size = 0x800, scoped, tag = 'scratch operand']
  #allocation4 [shape = 'f32[4,32]{1,0:T(4,128)}', space=vmem, size = 0x800, scoped, tag = 'scratch operand']
  #allocation5 [shape = 'f32[4,32]{1,0:T(4,128)}', space=vmem, size = 0x800, scoped, tag = 'scratch operand']
  %s0 = inlined_call_operand.vmem [shape: s32[4,1], index: 0, kind: input, shape index: {}]
  %s1 = inlined_call_operand.vmem [shape: f32[12,4,16], index: 1, kind: input, shape index: {}, may-alias: {1,2}]
  %s2 = inlined_call_operand.vmem [shape: f32[12,4,16], index: 2, kind: input, shape index: {}, may-alias: {1,2}]
  %s3 = inlined_call_operand.hbm [shape: f32[16,128], index: 3, kind: input, shape index: {}]
  %s4 = inlined_call_operand.vmem [shape: f32[32,128], index: 4, kind: input, shape index: {}]
  %s5 = inlined_call_operand.vmem [shape: f32[1,128], index: 5, kind: input, shape index: {}]
  %s6 = inlined_call_operand.hbm [shape: f32[16,128], index: 6, kind: input, shape index: {}]
  %s7 = inlined_call_operand.hbm [shape: f32[32,128], index: 7, kind: input, shape index: {}]
  %s8 = inlined_call_operand.vmem [shape: f32[1,128], index: 8, kind: input, shape index: {}]
  %s9 = inlined_call_operand.vmem [shape: f32[12,4,32], index: 9, kind: output, shape index: {0}]
  %s10 = inlined_call_operand.vmem [shape: f32[12,4,32], index: 10, kind: output, shape index: {1}]
  %11 = xla_tuple %s9, %s10
  %s12 = sld [smem:[#allocation0]]
  $region93: #{rnn_forward.2} parent=0
    _
  %s14 = ssub.s32 1, %s12
  %s15 = scalar_select 0, %s14, %s12
  $region1: #{rnn_forward.2} parent=0
    #allocation6 [shape = 'u8[8192]{0}', space=vmem, size = 0x2000, scoped, tag = 'input window, operand 3, single buffered']
    #allocation7 [shape = 's32[2]{0}', space=sflag, size = 0x8, scoped, tag = 'scoped memory for rnn_forward.2']
    #allocation8 [shape = 'u8[8192]{0}', space=vmem, size = 0x2000, scoped, tag = 'input window, operand 6, single buffered']
    #allocation9 [shape = 's32[1]{0}', space=sflag, size = 0x4, scoped, tag = 'scoped memory for rnn_forward.2']
    #allocation10 [shape = 'u8[16384]{0}', space=vmem, size = 0x4000, scoped, tag = 'input window, operand 7, single buffered']
    %16 = vsyncpa [#allocation7], 0
    %17 = vsyncpa [#allocation9], 0
    loop: start=0, step=1, limit=14
    $region2: #{rnn_forward.2} parent=1 // loop_pre_header
      _
    $region3: #{rnn_forward.2} parent=1 // loop_header
      %s19 = sphi 0, %s23
      %p20 = scmp.ge.s32.totalorder %s19, 14
      %s27 = sphi 0, %s27
      %s29 = sphi 0, %s27
      %s30 = sphi 0, %s29
      %s44 = sphi 0, %s30
      %s50 = sphi 0, %s52
      %s53 = sphi 0, %s50
      %s54 = sphi 0, %s53
      %s70 = sphi 0, %s54
      %s78 = sphi 0, %s80
      %s81 = sphi 0, %s78
      %s82 = sphi 0, %s81
      %s98 = sphi 0, %s82
      %s102 = sphi 0, %s102
      %s104 = sphi 0, %s102
      %s105 = sphi 0, %s104
      %s119 = sphi 0, %s105
      %s123 = sphi 0, %s123
      %s125 = sphi 0, %s123
      %s126 = sphi 0, %s125
      %s140 = sphi 0, %s126
      %s144 = sphi 0, %s144
      %s146 = sphi 0, %s144
      %s147 = sphi 0, %s146
      %s161 = sphi 0, %s147
      %s165 = sphi 0, %s165
      %s167 = sphi 0, %s165
      %s168 = sphi 0, %s167
      %s182 = sphi 0, %s168
      %s186 = sphi 0, %s186
      %s188 = sphi 0, %s186
      %s189 = sphi 0, %s188
      %s203 = sphi 0, %s189
      %s207 = sphi 0, %s207
      %s209 = sphi 0, %s207
      %s210 = sphi 0, %s209
      %s224 = sphi 0, %s210
      %s230 = sphi 0, %s232
      %s233 = sphi 0, %s230
      %s234 = sphi 0, %s233
      %s250 = sphi 0, %s234
      %s258 = sphi 0, %s260
      %s261 = sphi 0, %s258
      %s262 = sphi 0, %s261
      %s278 = sphi 0, %s262
    $region4: #{rnn_forward.2} parent=1 // loop_header_branch
      %22 = sbr.rel (%p20) target = $region8
    $region5: #{rnn_forward.2} parent=1 // loop_body
      %s24 = ssub.s32 %s19, 1
      %s25 = ssub.s32 %s19, 2
      %s26 = sadd.s32 %s19, 1
      %s28 = sadd.s32 %s27, 1
      %p31 = scmp.eq.s32.totalorder %s19, 11
      %p32 = scmp.ne.s32.totalorder %s27, %s29
      %p33 = scmp.eq.s32.totalorder %s19, 0
      %p34 = por %p32, %p33
      %p35 = scmp.ne.s32.totalorder %s27, %s29
      %p36 = scmp.eq.s32.totalorder %s24, 11
      %p37 = por %p35, %p36
      %p38 = scmp.ne.s32.totalorder %s29, %s30
      %p39 = scmp.eq.s32.totalorder %s24, 0
      %p40 = por %p38, %p39
      %p41 = scmp.ne.s32.totalorder %s29, %s30
      %p42 = scmp.eq.s32.totalorder %s25, 11
      %p43 = por %p41, %p42
      %p45 = scmp.ne.s32.totalorder %s30, %s44
      %p46 = scmp.eq.s32.totalorder %s25, 0
      %p47 = por %p45, %p46
      %s48 = ssub.s32 %s19, %s26
      %p49 = scmp.eq.s32.totalorder %s48, 0
      %s51 = sadd.s32 %s50, 1
      %s52 = scalar_select %p49, %s50, %s51
      %p55 = pneg %p49
      %p56 = scmp.eq.s32.totalorder %s19, 11
      %p57 = por %p55, %p56
      %p58 = scmp.ne.s32.totalorder %s50, %s53
      %p59 = scmp.eq.s32.totalorder %s19, 0
      %p60 = por %p58, %p59
      %p61 = scmp.ne.s32.totalorder %s50, %s53
      %p62 = scmp.eq.s32.totalorder %s24, 11
      %p63 = por %p61, %p62
      %p64 = scmp.ne.s32.totalorder %s53, %s54
      %p65 = scmp.eq.s32.totalorder %s24, 0
      %p66 = por %p64, %p65
      %p67 = scmp.ne.s32.totalorder %s53, %s54
      %p68 = scmp.eq.s32.totalorder %s25, 11
      %p69 = por %p67, %p68
      %p71 = scmp.ne.s32.totalorder %s54, %s70
      %p72 = scmp.eq.s32.totalorder %s25, 0
      %p73 = por %p71, %p72
      %s74 = ssub.s32 11, %s19
      %s75 = ssub.s32 11, %s26
      %s76 = ssub.s32 %s74, %s75
      %p77 = scmp.eq.s32.totalorder %s76, 0
      %s79 = sadd.s32 %s78, 1
      %s80 = scalar_select %p77, %s78, %s79
      %p83 = pneg %p77
      %p84 = scmp.eq.s32.totalorder %s19, 11
      %p85 = por %p83, %p84
      %p86 = scmp.ne.s32.totalorder %s78, %s81
      %p87 = scmp.eq.s32.totalorder %s19, 0
      %p88 = por %p86, %p87
      %p89 = scmp.ne.s32.totalorder %s78, %s81
      %p90 = scmp.eq.s32.totalorder %s24, 11
      %p91 = por %p89, %p90
      %p92 = scmp.ne.s32.totalorder %s81, %s82
      %p93 = scmp.eq.s32.totalorder %s24, 0
      %p94 = por %p92, %p93
      %p95 = scmp.ne.s32.totalorder %s81, %s82
      %p96 = scmp.eq.s32.totalorder %s25, 11
      %p97 = por %p95, %p96
      %p99 = scmp.ne.s32.totalorder %s82, %s98
      %p100 = scmp.eq.s32.totalorder %s25, 0
      %p101 = por %p99, %p100
      %s103 = sadd.s32 %s102, 1
      %p106 = scmp.eq.s32.totalorder %s19, 11
      %p107 = scmp.ne.s32.totalorder %s102, %s104
      %p108 = scmp.eq.s32.totalorder %s19, 0
      %p109 = por %p107, %p108
      %p110 = scmp.ne.s32.totalorder %s102, %s104
      %p111 = scmp.eq.s32.totalorder %s24, 11
      %p112 = por %p110, %p111
      %p113 = scmp.ne.s32.totalorder %s104, %s105
      %p114 = scmp.eq.s32.totalorder %s24, 0
      %p115 = por %p113, %p114
      %p116 = scmp.ne.s32.totalorder %s104, %s105
      %p117 = scmp.eq.s32.totalorder %s25, 11
      %p118 = por %p116, %p117
      %p120 = scmp.ne.s32.totalorder %s105, %s119
      %p121 = scmp.eq.s32.totalorder %s25, 0
      %p122 = por %p120, %p121
      %s124 = sadd.s32 %s123, 1
      %p127 = scmp.eq.s32.totalorder %s19, 11
      %p128 = scmp.ne.s32.totalorder %s123, %s125
      %p129 = scmp.eq.s32.totalorder %s19, 0
      %p130 = por %p128, %p129
      %p131 = scmp.ne.s32.totalorder %s123, %s125
      %p132 = scmp.eq.s32.totalorder %s24, 11
      %p133 = por %p131, %p132
      %p134 = scmp.ne.s32.totalorder %s125, %s126
      %p135 = scmp.eq.s32.totalorder %s24, 0
      %p136 = por %p134, %p135
      %p137 = scmp.ne.s32.totalorder %s125, %s126
      %p138 = scmp.eq.s32.totalorder %s25, 11
      %p139 = por %p137, %p138
      %p141 = scmp.ne.s32.totalorder %s126, %s140
      %p142 = scmp.eq.s32.totalorder %s25, 0
      %p143 = por %p141, %p142
      %s145 = sadd.s32 %s144, 1
      %p148 = scmp.eq.s32.totalorder %s19, 11
      %p149 = scmp.ne.s32.totalorder %s144, %s146
      %p150 = scmp.eq.s32.totalorder %s19, 0
      %p151 = por %p149, %p150
      %p152 = scmp.ne.s32.totalorder %s144, %s146
      %p153 = scmp.eq.s32.totalorder %s24, 11
      %p154 = por %p152, %p153
      %p155 = scmp.ne.s32.totalorder %s146, %s147
      %p156 = scmp.eq.s32.totalorder %s24, 0
      %p157 = por %p155, %p156
      %p158 = scmp.ne.s32.totalorder %s146, %s147
      %p159 = scmp.eq.s32.totalorder %s25, 11
      %p160 = por %p158, %p159
      %p162 = scmp.ne.s32.totalorder %s147, %s161
      %p163 = scmp.eq.s32.totalorder %s25, 0
      %p164 = por %p162, %p163
      %s166 = sadd.s32 %s165, 1
      %p169 = scmp.eq.s32.totalorder %s19, 11
      %p170 = scmp.ne.s32.totalorder %s165, %s167
      %p171 = scmp.eq.s32.totalorder %s19, 0
      %p172 = por %p170, %p171
      %p173 = scmp.ne.s32.totalorder %s165, %s167
      %p174 = scmp.eq.s32.totalorder %s24, 11
      %p175 = por %p173, %p174
      %p176 = scmp.ne.s32.totalorder %s167, %s168
      %p177 = scmp.eq.s32.totalorder %s24, 0
      %p178 = por %p176, %p177
      %p179 = scmp.ne.s32.totalorder %s167, %s168
      %p180 = scmp.eq.s32.totalorder %s25, 11
      %p181 = por %p179, %p180
      %p183 = scmp.ne.s32.totalorder %s168, %s182
      %p184 = scmp.eq.s32.totalorder %s25, 0
      %p185 = por %p183, %p184
      %s187 = sadd.s32 %s186, 1
      %p190 = scmp.eq.s32.totalorder %s19, 11
      %p191 = scmp.ne.s32.totalorder %s186, %s188
      %p192 = scmp.eq.s32.totalorder %s19, 0
      %p193 = por %p191, %p192
      %p194 = scmp.ne.s32.totalorder %s186, %s188
      %p195 = scmp.eq.s32.totalorder %s24, 11
      %p196 = por %p194, %p195
      %p197 = scmp.ne.s32.totalorder %s188, %s189
      %p198 = scmp.eq.s32.totalorder %s24, 0
      %p199 = por %p197, %p198
      %p200 = scmp.ne.s32.totalorder %s188, %s189
      %p201 = scmp.eq.s32.totalorder %s25, 11
      %p202 = por %p200, %p201
      %p204 = scmp.ne.s32.totalorder %s189, %s203
      %p205 = scmp.eq.s32.totalorder %s25, 0
      %p206 = por %p204, %p205
      %s208 = sadd.s32 %s207, 1
      %p211 = scmp.eq.s32.totalorder %s19, 11
      %p212 = scmp.ne.s32.totalorder %s207, %s209
      %p213 = scmp.eq.s32.totalorder %s19, 0
      %p214 = por %p212, %p213
      %p215 = scmp.ne.s32.totalorder %s207, %s209
      %p216 = scmp.eq.s32.totalorder %s24, 11
      %p217 = por %p215, %p216
      %p218 = scmp.ne.s32.totalorder %s209, %s210
      %p219 = scmp.eq.s32.totalorder %s24, 0
      %p220 = por %p218, %p219
      %p221 = scmp.ne.s32.totalorder %s209, %s210
      %p222 = scmp.eq.s32.totalorder %s25, 11
      %p223 = por %p221, %p222
      %p225 = scmp.ne.s32.totalorder %s210, %s224
      %p226 = scmp.eq.s32.totalorder %s25, 0
      %p227 = por %p225, %p226
      %s228 = ssub.s32 %s19, %s26
      %p229 = scmp.eq.s32.totalorder %s228, 0
      %s231 = sadd.s32 %s230, 1
      %s232 = scalar_select %p229, %s230, %s231
      %p235 = pneg %p229
      %p236 = scmp.eq.s32.totalorder %s19, 11
      %p237 = por %p235, %p236
      %p238 = scmp.ne.s32.totalorder %s230, %s233
      %p239 = scmp.eq.s32.totalorder %s19, 0
      %p240 = por %p238, %p239
      %p241 = scmp.ne.s32.totalorder %s230, %s233
      %p242 = scmp.eq.s32.totalorder %s24, 11
      %p243 = por %p241, %p242
      %p244 = scmp.ne.s32.totalorder %s233, %s234
      %p245 = scmp.eq.s32.totalorder %s24, 0
      %p246 = por %p244, %p245
      %p247 = scmp.ne.s32.totalorder %s233, %s234
      %p248 = scmp.eq.s32.totalorder %s25, 11
      %p249 = por %p247, %p248
      %p251 = scmp.ne.s32.totalorder %s234, %s250
      %p252 = scmp.eq.s32.totalorder %s25, 0
      %p253 = por %p251, %p252
      %s254 = ssub.s32 11, %s19
      %s255 = ssub.s32 11, %s26
      %s256 = ssub.s32 %s254, %s255
      %p257 = scmp.eq.s32.totalorder %s256, 0
      %s259 = sadd.s32 %s258, 1
      %s260 = scalar_select %p257, %s258, %s259
      %p263 = pneg %p257
      %p264 = scmp.eq.s32.totalorder %s19, 11
      %p265 = por %p263, %p264
      %p266 = scmp.ne.s32.totalorder %s258, %s261
      %p267 = scmp.eq.s32.totalorder %s19, 0
      %p268 = por %p266, %p267
      %p269 = scmp.ne.s32.totalorder %s258, %s261
      %p270 = scmp.eq.s32.totalorder %s24, 11
      %p271 = por %p269, %p270
      %p272 = scmp.ne.s32.totalorder %s261, %s262
      %p273 = scmp.eq.s32.totalorder %s24, 0
      %p274 = por %p272, %p273
      %p275 = scmp.ne.s32.totalorder %s261, %s262
      %p276 = scmp.eq.s32.totalorder %s25, 11
      %p277 = por %p275, %p276
      %p279 = scmp.ne.s32.totalorder %s262, %s278
      %p280 = scmp.eq.s32.totalorder %s25, 0
      %p281 = por %p279, %p280
      %p282 = scmp.le.s32.totalorder 1, %s19
      %p283 = scmp.lt.s32.totalorder %s19, 13
      %p284 = pnand %p282, %p283
      %p285 = pneg %p284
      // Predicated region
      $region9: #{rnn_forward.2} parent=5 // pred_check
        _
      $region10: #{rnn_forward.2} parent=5 // pred_check_branch
        %287 = sbr.rel (%p284) target = $region12
      $region11: #{rnn_forward.2} parent=5 // pred_region
        %s288 = ssub.s32 %s19, 1
        // Predicated region
        $region13: #{rnn_forward.2} parent=11 // pred_check
          %p289 = pneg %p40
        $region14: #{rnn_forward.2} parent=11 // pred_check_branch
          %291 = sbr.rel (%p289) target = $region16
        $region15: #{rnn_forward.2} parent=11 // pred_region
          _
        $region16: #{rnn_forward.2} parent=11 // pred_fallthru
          _
        // Predicated region
        $region17: #{rnn_forward.2} parent=11 // pred_check
          %p292 = pneg %p115
        $region18: #{rnn_forward.2} parent=11 // pred_check_branch
          %294 = sbr.rel (%p292) target = $region20
        $region19: #{rnn_forward.2} parent=11 // pred_region
          %s296 = ssub.s32 256, 256
          %297 = vsyncadd [#allocation7], %s296
          %s298 = sshll.u32 [#allocation6], 4
          %s299 = int_to_ptr.vmem [resolvable:$true] %s298
          %304 = dma.hbm_to_vmem [thread:$0]  %s3, 256, %s299, [#allocation7], 128, 128, 8
        $region20: #{rnn_forward.2} parent=11 // pred_fallthru
          _
        // Predicated region
        $region21: #{rnn_forward.2} parent=11 // pred_check
          %p305 = pneg %p136
        $region22: #{rnn_forward.2} parent=11 // pred_check_branch
          %307 = sbr.rel (%p305) target = $region24
        $region23: #{rnn_forward.2} parent=11 // pred_region
          _
        $region24: #{rnn_forward.2} parent=11 // pred_fallthru
          _
        // Predicated region
        $region25: #{rnn_forward.2} parent=11 // pred_check
          %p308 = pneg %p157
        $region26: #{rnn_forward.2} parent=11 // pred_check_branch
          %310 = sbr.rel (%p308) target = $region28
        $region27: #{rnn_forward.2} parent=11 // pred_region
          _
        $region28: #{rnn_forward.2} parent=11 // pred_fallthru
          _
        // Predicated region
        $region29: #{rnn_forward.2} parent=11 // pred_check
          %p311 = pneg %p178
        $region30: #{rnn_forward.2} parent=11 // pred_check_branch
          %313 = sbr.rel (%p311) target = $region32
        $region31: #{rnn_forward.2} parent=11 // pred_region
          %s315 = ssub.s32 256, 256
          %316 = vsyncadd [#allocation9], %s315
          %s317 = sshll.u32 [#allocation8], 4
          %s318 = int_to_ptr.vmem [resolvable:$true] %s317
          %323 = dma.hbm_to_vmem [thread:$0]  %s6, 256, %s318, [#allocation9], 128, 128, 8
        $region32: #{rnn_forward.2} parent=11 // pred_fallthru
          _
        // Predicated region
        $region33: #{rnn_forward.2} parent=11 // pred_check
          %p324 = pneg %p199
        $region34: #{rnn_forward.2} parent=11 // pred_check_branch
          %326 = sbr.rel (%p324) target = $region36
        $region35: #{rnn_forward.2} parent=11 // pred_region
          %s328 = ssub.s32 512, 512
          %329 = vsyncadd [#allocation9], %s328
          %s330 = sshll.u32 [#allocation10], 4
          %s331 = int_to_ptr.vmem [resolvable:$true] %s330
          %336 = dma.hbm_to_vmem [thread:$0]  %s7, 512, %s331, [#allocation9], 128, 128, 8
        $region36: #{rnn_forward.2} parent=11 // pred_fallthru
          _
        // Predicated region
        $region37: #{rnn_forward.2} parent=11 // pred_check
          %p337 = pneg %p220
        $region38: #{rnn_forward.2} parent=11 // pred_check_branch
          %339 = sbr.rel (%p337) target = $region40
        $region39: #{rnn_forward.2} parent=11 // pred_region
          _
        $region40: #{rnn_forward.2} parent=11 // pred_fallthru
          _
      $region12: #{rnn_forward.2} parent=5 // pred_fallthru
        _
      %p340 = scmp.lt.s32.totalorder %s19, 12
      // Predicated region
      $region41: #{rnn_forward.2} parent=5 // pred_check
        %p341 = pneg %p340
      $region42: #{rnn_forward.2} parent=5 // pred_check_branch
        %343 = sbr.rel (%p341) target = $region44
      $region43: #{rnn_forward.2} parent=5 // pred_region
        // Predicated region
        $region45: #{rnn_forward.2} parent=43 // pred_check
          %p344 = pneg %p60
        $region46: #{rnn_forward.2} parent=43 // pred_check_branch
          %346 = sbr.rel (%p344) target = $region48
        $region47: #{rnn_forward.2} parent=43 // pred_region
          %p347 = scmp.lt.s32.totalorder %s19, 11
          %s348 = scalar_select %p347, %s19, 11
          %s349 = smul.addr %s348, 4
          %s350 = scalar_lea.vmem %s1, %s349
        $region48: #{rnn_forward.2} parent=43 // pred_fallthru
          _
        // Predicated region
        $region49: #{rnn_forward.2} parent=43 // pred_check
          %p351 = pneg %p88
        $region50: #{rnn_forward.2} parent=43 // pred_check_branch
          %353 = sbr.rel (%p351) target = $region52
        $region51: #{rnn_forward.2} parent=43 // pred_region
          %s354 = ssub.s32 11, %s19
          %p355 = scmp.lt.s32.totalorder %s354, 11
          %s356 = scalar_select %p355, %s354, 11
          %s357 = smul.addr %s356, 4
          %s358 = scalar_lea.vmem %s2, %s357
          %s359 = ssub.s32 11, %s19
        $region52: #{rnn_forward.2} parent=43 // pred_fallthru
          _
      $region44: #{rnn_forward.2} parent=5 // pred_fallthru
        _
      %p360 = scmp.le.s32.totalorder 1, %s19
      %p361 = scmp.lt.s32.totalorder %s19, 13
      %p362 = pnand %p360, %p361
      %p363 = pneg %p362
      // Predicated region
      $region53: #{rnn_forward.2} parent=5 // pred_check
        _
      $region54: #{rnn_forward.2} parent=5 // pred_check_branch
        %365 = sbr.rel (%p362) target = $region56
      $region55: #{rnn_forward.2} parent=5 // pred_region
        %s366 = ssub.s32 %s19, 1
        // Predicated region
        $region57: #{rnn_forward.2} parent=55 // pred_check
          %p367 = pneg %p115
        $region58: #{rnn_forward.2} parent=55 // pred_check_branch
          %369 = sbr.rel (%p367) target = $region60
        $region59: #{rnn_forward.2} parent=55 // pred_region
          %370 = dma.done [#allocation7], 256
        $region60: #{rnn_forward.2} parent=55 // pred_fallthru
          _
        // Predicated region
        $region61: #{rnn_forward.2} parent=55 // pred_check
          %p371 = pneg %p178
        $region62: #{rnn_forward.2} parent=55 // pred_check_branch
          %373 = sbr.rel (%p371) target = $region64
        $region63: #{rnn_forward.2} parent=55 // pred_region
          %374 = dma.done [#allocation9], 256
        $region64: #{rnn_forward.2} parent=55 // pred_fallthru
          _
        // Predicated region
        $region65: #{rnn_forward.2} parent=55 // pred_check
          %p375 = pneg %p199
        $region66: #{rnn_forward.2} parent=55 // pred_check_branch
          %377 = sbr.rel (%p375) target = $region68
        $region67: #{rnn_forward.2} parent=55 // pred_region
          %378 = dma.done [#allocation9], 512
        $region68: #{rnn_forward.2} parent=55 // pred_fallthru
          _
        %p379 = pneg %p40
        %p380 = pneg %p37
        %p381 = scmp.lt.s32.totalorder %s24, 11
        %s382 = scalar_select %p381, %s24, 11
        %s383 = smul.addr %s382, 4
        %s384 = scalar_lea.vmem %s1, %s383
        %p385 = pneg %p66
        %p386 = pneg %p63
        %s387 = ssub.s32 11, %s24
        %p388 = scmp.lt.s32.totalorder %s387, 11
        %s389 = scalar_select %p388, %s387, 11
        %s390 = smul.addr %s389, 4
        %s391 = scalar_lea.vmem %s2, %s390
        %p392 = pneg %p94
        %p393 = pneg %p91
        %p394 = pneg %p115
        %p395 = pneg %p112
        %p396 = pneg %p136
        %p397 = pneg %p133
        %p398 = pneg %p157
        %p399 = pneg %p154
        %p400 = pneg %p178
        %p401 = pneg %p175
        %p402 = pneg %p199
        %p403 = pneg %p196
        %p404 = pneg %p220
        %p405 = pneg %p217
        %p406 = pneg %p246
        %p407 = pneg %p243
        %p408 = scmp.lt.s32.totalorder %s24, 11
        %s409 = scalar_select %p408, %s24, 11
        %s410 = smul.addr %s409, 4
        %s411 = scalar_lea.vmem %s9, %s410
        %p412 = pneg %p274
        %p413 = pneg %p271
        %s414 = ssub.s32 11, %s24
        %p415 = scmp.lt.s32.totalorder %s414, 11
        %s416 = scalar_select %p415, %s414, 11
        %s417 = smul.addr %s416, 4
        %s418 = scalar_lea.vmem %s10, %s417
        %p419 = scmp.lt.s32.totalorder %s24, 11
        %s420 = scalar_select %p419, %s24, 11
        %s421 = smul.addr %s420, 4
        %s422 = scalar_lea.vmem %s1, %s421
        %s423 = ssub.s32 11, %s24
        %p424 = scmp.lt.s32.totalorder %s423, 11
        %s425 = scalar_select %p424, %s423, 11
        %s426 = smul.addr %s425, 4
        %s427 = scalar_lea.vmem %s2, %s426
        %s428 = ssub.s32 11, %s24
        %p429 = scmp.lt.s32.totalorder %s24, 11
        %s430 = scalar_select %p429, %s24, 11
        %s431 = smul.addr %s430, 4
        %s432 = scalar_lea.vmem %s9, %s431
        %s433 = ssub.s32 11, %s24
        %p434 = scmp.lt.s32.totalorder %s433, 11
        %s435 = scalar_select %p434, %s433, 11
        %s436 = smul.addr %s435, 4
        %s437 = scalar_lea.vmem %s10, %s436
        %s438 = ssub.s32 11, %s24
        %p439 = scmp.eq.s32.totalorder %s24, 0
        // Predicated region
        $region69: #{rnn_forward.2} parent=55 // pred_check
          %p440 = pneg %p439
        $region70: #{rnn_forward.2} parent=55 // pred_check_branch
          %442 = sbr.rel (%p440) target = $region72
        $region71: #{rnn_forward.2} parent=55 // pred_region
          %vm443 = vcmask 257024
          %444 = vst.msk [vmem:[#allocation2] sm:$0xf] %vm443, 0.0
          %445 = vst.msk [vmem:[#allocation3] sm:$0xf] %vm443, 0.0
          %446 = vst.msk [vmem:[#allocation4] sm:$0xf] %vm443, 0.0
          %447 = vst.msk [vmem:[#allocation5] sm:$0xf] %vm443, 0.0
        $region72: #{rnn_forward.2} parent=55 // pred_fallthru
          _
        %v448 = vld [vmem:[%s0] sm:$0xf]
        %v449 = vstv %s24
        %vm450 = vcmp.gt.s32.totalorder %v448, %v449
        %v451 = vld [vmem:[%s422] sm:$0xf]
        %v452 = vld [vmem:[#allocation2] sm:$0xf]
        %v453 = vld [vmem:[#allocation3] sm:$0xf]
        %v454 = vld [vmem:[#allocation6] sm:$0xff]
        %v455 = vld [vmem:[#allocation6 + $0x8] sm:$0xff]
        %v456 = vld [vmem:[%s4] sm:$0xff]
        %v457 = vld [vmem:[%s4 + $0x8] sm:$0xff]
        %v458 = vld [vmem:[%s4 + $0x10] sm:$0xff]
        %v459 = vld [vmem:[%s4 + $0x18] sm:$0xff]
        %v460 = vld [vmem:[%s5] sm:$0x1]
        %vm461 = vcmask 261120
        %v463 = vsel %vm461, %v452, 0
        %465 = vmatprep.subr.mxu0 0.0
        %466 = vmatpush1.msra.mxu0 %v456
        %467 = vmatprep.subr.mxu0 0.0
        %468 = vmatpush1.msra.mxu0 %v457
        %469 = vmatprep.subr.mxu0 0.0
        %470 = vmatpush1.msra.mxu0 %v458
        %471 = vmatprep.subr.mxu0 0.0
        %472 = vmatpush1.msra.mxu0 %v459
        %473 = vmatprep.subr.mxu0 0.0
        %474 = vmatpush1.msra.mxu0 0.0
        %475 = vmatprep.subr.mxu0 0.0
        %476 = vmatpush1.msra.mxu0 0.0
        %477 = vmatprep.subr.mxu0 0.0
        %478 = vmatpush1.msra.mxu0 0.0
        %479 = vmatprep.subr.mxu0 0.0
        %480 = vmatpush1.msra.mxu0 0.0
        %481 = vmatprep.subr.mxu0 0.0
        %482 = vmatpush1.msra.mxu0 0.0
        %483 = vmatprep.subr.mxu0 0.0
        %484 = vmatpush1.msra.mxu0 0.0
        %485 = vmatprep.subr.mxu0 0.0
        %486 = vmatpush1.msra.mxu0 0.0
        %487 = vmatprep.subr.mxu0 0.0
        %488 = vmatpush1.msra.mxu0 0.0
        %489 = vmatprep.subr.mxu0 0.0
        %490 = vmatpush1.msra.mxu0 0.0
        %491 = vmatprep.subr.mxu0 0.0
        %492 = vmatpush1.msra.mxu0 0.0
        %493 = vmatprep.subr.mxu0 0.0
        %494 = vmatpush1.msra.mxu0 0.0
        %495 = vmatprep.subr.mxu0 0.0
        %496 = vmatpush1.msra.mxu0 0.0
        %497 = vmatprep.subr.mxu0 0.0
        %498 = vmatpush1.msra.mxu0 0.0
        %499 = vmatprep.subr.mxu0 0.0
        %500 = vmatpush1.msra.mxu0 0.0
        %501 = vmatprep.subr.mxu0 0.0
        %502 = vmatpush1.msra.mxu0 0.0
        %503 = vmatprep.subr.mxu0 0.0
        %504 = vmatpush1.msra.mxu0 0.0
        %505 = vmatprep.subr.mxu0 0.0
        %506 = vmatpush1.msra.mxu0 0.0
        %507 = vmatprep.subr.mxu0 0.0
        %508 = vmatpush1.msra.mxu0 0.0
        %509 = vmatprep.subr.mxu0 0.0
        %510 = vmatpush1.msra.mxu0 0.0
        %511 = vmatprep.subr.mxu0 0.0
        %512 = vmatpush1.msra.mxu0 0.0
        %513 = vmatprep.subr.mxu0 0.0
        %514 = vmatpush1.msra.mxu0 0.0
        %515 = vmatprep.subr.mxu0 0.0
        %516 = vmatpush1.msra.mxu0 0.0
        %517 = vmatprep.subr.mxu0 0.0
        %518 = vmatpush1.msra.mxu0 0.0
        %519 = vmatprep.subr.mxu0 0.0
        %520 = vmatpush1.msra.mxu0 0.0
        %521 = vmatprep.subr.mxu0 0.0
        %522 = vmatpush1.msra.mxu0 0.0
        %523 = vmatprep.subr.mxu0 0.0
        %524 = vmatpush1.msra.mxu0 0.0
        %525 = vmatprep.subr.mxu0 0.0
        %526 = vmatpush1.msra.mxu0 0.0
        %527 = vmatprep.subr.mxu0 0.0
        %528 = vmatpush1.msra.mxu0 0.0
        %529 = vmatprep.mubr.f32.mxu0 0.0
        %530 = vmatmul.mubr.f32.gmra.mrb[0].mxu0 %v463
        %v531 = vpop.f32.mrb[0].mxu0
        %v532 = vadd.f32 0.0, %v531
        %v533 = vpop.f32.mrb[0].mxu0
        %534 = vdwg.mxu0
        %vm535 = vcmask 130048
        %v537 = vsel %vm535, %v451, 0
        %539 = vmatprep.subr.mxu0 0.0
        %540 = vmatpush1.msra.mxu0 %v454
        %541 = vmatprep.subr.mxu0 0.0
        %542 = vmatpush1.msra.mxu0 %v455
        %543 = vmatprep.subr.mxu0 0.0
        %544 = vmatpush1.msra.mxu0 0.0
        %545 = vmatprep.subr.mxu0 0.0
        %546 = vmatpush1.msra.mxu0 0.0
        %547 = vmatprep.subr.mxu0 0.0
        %548 = vmatpush1.msra.mxu0 0.0
        %549 = vmatprep.subr.mxu0 0.0
        %550 = vmatpush1.msra.mxu0 0.0
        %551 = vmatprep.subr.mxu0 0.0
        %552 = vmatpush1.msra.mxu0 0.0
        %553 = vmatprep.subr.mxu0 0.0
        %554 = vmatpush1.msra.mxu0 0.0
        %555 = vmatprep.subr.mxu0 0.0
        %556 = vmatpush1.msra.mxu0 0.0
        %557 = vmatprep.subr.mxu0 0.0
        %558 = vmatpush1.msra.mxu0 0.0
        %559 = vmatprep.subr.mxu0 0.0
        %560 = vmatpush1.msra.mxu0 0.0
        %561 = vmatprep.subr.mxu0 0.0
        %562 = vmatpush1.msra.mxu0 0.0
        %563 = vmatprep.subr.mxu0 0.0
        %564 = vmatpush1.msra.mxu0 0.0
        %565 = vmatprep.subr.mxu0 0.0
        %566 = vmatpush1.msra.mxu0 0.0
        %567 = vmatprep.subr.mxu0 0.0
        %568 = vmatpush1.msra.mxu0 0.0
        %569 = vmatprep.subr.mxu0 0.0
        %570 = vmatpush1.msra.mxu0 0.0
        %571 = vmatprep.subr.mxu0 0.0
        %572 = vmatpush1.msra.mxu0 0.0
        %573 = vmatprep.subr.mxu0 0.0
        %574 = vmatpush1.msra.mxu0 0.0
        %575 = vmatprep.subr.mxu0 0.0
        %576 = vmatpush1.msra.mxu0 0.0
        %577 = vmatprep.subr.mxu0 0.0
        %578 = vmatpush1.msra.mxu0 0.0
        %579 = vmatprep.subr.mxu0 0.0
        %580 = vmatpush1.msra.mxu0 0.0
        %581 = vmatprep.subr.mxu0 0.0
        %582 = vmatpush1.msra.mxu0 0.0
        %583 = vmatprep.subr.mxu0 0.0
        %584 = vmatpush1.msra.mxu0 0.0
        %585 = vmatprep.subr.mxu0 0.0
        %586 = vmatpush1.msra.mxu0 0.0
        %587 = vmatprep.subr.mxu0 0.0
        %588 = vmatpush1.msra.mxu0 0.0
        %589 = vmatprep.subr.mxu0 0.0
        %590 = vmatpush1.msra.mxu0 0.0
        %591 = vmatprep.subr.mxu0 0.0
        %592 = vmatpush1.msra.mxu0 0.0
        %593 = vmatprep.subr.mxu0 0.0
        %594 = vmatpush1.msra.mxu0 0.0
        %595 = vmatprep.subr.mxu0 0.0
        %596 = vmatpush1.msra.mxu0 0.0
        %597 = vmatprep.subr.mxu0 0.0
        %598 = vmatpush1.msra.mxu0 0.0
        %599 = vmatprep.subr.mxu0 0.0
        %600 = vmatpush1.msra.mxu0 0.0
        %601 = vmatprep.subr.mxu0 0.0
        %602 = vmatpush1.msra.mxu0 0.0
        %603 = vmatprep.mubr.f32.mxu0 0.0
        %604 = vmatmul.mubr.f32.gmra.mrb[0].mxu0 %v537
        %v605 = vpop.f32.mrb[0].mxu0
        %v606 = vadd.f32 %v532, %v605
        %v607 = vpop.f32.mrb[0].mxu0
        %608 = vdwg.mxu0
        %v610 = vlaneseq
        %v611 = vshrl.u32 %v610, 7
        %v612 = vsub.s32 0, %v611
        %v613 = vrot.slane %v460, %v612
        %v615 = vadd.f32 %v606, %v613
        %v616 = vsub.f32 0.0, %v615
        %v617 = vmul.f32 %v616, 1.442695
        %v618 = vpow.pop %v617
        %v619 = vadd.f32 %v618, 1.0
        %v620 = vrcp.pop %v619
        %v621 = vmul.f32 1.0, %v620
        %v622 = vtanh.pop %v615
        %624 = vrot.lane.b32.xlu0 %v453, 32
        %v625 = vpop.permute.xlu0 %624
        %v627 = vmul.f32 %v621, %v625
        %629 = vrot.lane.b32.xlu0 %v622, 64
        %v630 = vpop.permute.xlu0 %629
        %v632 = vmul.f32 %v621, %v630
        %634 = vrot.lane.b32.xlu0 %v632, 32
        %v635 = vpop.permute.xlu0 %634
        %v637 = vadd.f32 %v627, %v635
        %v638 = vtanh.pop %v637
        %640 = vrot.lane.b32.xlu0 %v638, 64
        %v641 = vpop.permute.xlu0 %640
        %v643 = vmul.f32 %v621, %v641
        %v644 = vsel %vm450, 1, 0
        %645 = vset.pattern.permute.xlu0 0
        %646 = vperm.xlu0 %645, %v644
        %v647 = vpop.permute.xlu0 %646
        %vm648 = vcmp.eq.s32.totalorder %v647, 1
        %v649 = vsel %vm648, %v637, %v625
        %650 = vrot.lane.b32.xlu0 %v452, 96
        %v651 = vpop.permute.xlu0 %650
        %v653 = vsel %vm648, %v643, %v651
        %v654 = vsel %vm648, %v643, 0.0
        %656 = vrot.lane.b32.xlu0 %v653, 32
        %v657 = vpop.permute.xlu0 %656
        %vm659 = vcmask 257024
        %660 = vst.msk [vmem:[#allocation2] sm:$0xf] %vm659, %v657
        %662 = vrot.lane.b32.xlu0 %v649, 96
        %v663 = vpop.permute.xlu0 %662
        %665 = vst.msk [vmem:[#allocation3] sm:$0xf] %vm659, %v663
        %667 = vrot.lane.b32.xlu0 %v654, 32
        %v668 = vpop.permute.xlu0 %667
        %670 = vst.msk [vmem:[%s432] sm:$0xf] %vm659, %v668
        %s671 = ssub.s32 11, %s24
        %v672 = vstv %s671
        %vm673 = vcmp.gt.s32.totalorder %v448, %v672
        %v674 = vld [vmem:[%s427] sm:$0xf]
        %v675 = vld [vmem:[#allocation4] sm:$0xf]
        %v676 = vld [vmem:[#allocation5] sm:$0xf]
        %v677 = vld [vmem:[#allocation8] sm:$0xff]
        %v678 = vld [vmem:[#allocation8 + $0x8] sm:$0xff]
        %v679 = vld [vmem:[#allocation10] sm:$0xff]
        %v680 = vld [vmem:[#allocation10 + $0x8] sm:$0xff]
        %v681 = vld [vmem:[#allocation10 + $0x10] sm:$0xff]
        %v682 = vld [vmem:[#allocation10 + $0x18] sm:$0xff]
        %v683 = vld [vmem:[%s8] sm:$0x1]
        %v685 = vsel %vm461, %v675, 0
        %687 = vmatprep.subr.mxu0 0.0
        %688 = vmatpush1.msra.mxu0 %v679
        %689 = vmatprep.subr.mxu0 0.0
        %690 = vmatpush1.msra.mxu0 %v680
        %691 = vmatprep.subr.mxu0 0.0
        %692 = vmatpush1.msra.mxu0 %v681
        %693 = vmatprep.subr.mxu0 0.0
        %694 = vmatpush1.msra.mxu0 %v682
        %695 = vmatprep.subr.mxu0 0.0
        %696 = vmatpush1.msra.mxu0 0.0
        %697 = vmatprep.subr.mxu0 0.0
        %698 = vmatpush1.msra.mxu0 0.0
        %699 = vmatprep.subr.mxu0 0.0
        %700 = vmatpush1.msra.mxu0 0.0
        %701 = vmatprep.subr.mxu0 0.0
        %702 = vmatpush1.msra.mxu0 0.0
        %703 = vmatprep.subr.mxu0 0.0
        %704 = vmatpush1.msra.mxu0 0.0
        %705 = vmatprep.subr.mxu0 0.0
        %706 = vmatpush1.msra.mxu0 0.0
        %707 = vmatprep.subr.mxu0 0.0
        %708 = vmatpush1.msra.mxu0 0.0
        %709 = vmatprep.subr.mxu0 0.0
        %710 = vmatpush1.msra.mxu0 0.0
        %711 = vmatprep.subr.mxu0 0.0
        %712 = vmatpush1.msra.mxu0 0.0
        %713 = vmatprep.subr.mxu0 0.0
        %714 = vmatpush1.msra.mxu0 0.0
        %715 = vmatprep.subr.mxu0 0.0
        %716 = vmatpush1.msra.mxu0 0.0
        %717 = vmatprep.subr.mxu0 0.0
        %718 = vmatpush1.msra.mxu0 0.0
        %719 = vmatprep.subr.mxu0 0.0
        %720 = vmatpush1.msra.mxu0 0.0
        %721 = vmatprep.subr.mxu0 0.0
        %722 = vmatpush1.msra.mxu0 0.0
        %723 = vmatprep.subr.mxu0 0.0
        %724 = vmatpush1.msra.mxu0 0.0
        %725 = vmatprep.subr.mxu0 0.0
        %726 = vmatpush1.msra.mxu0 0.0
        %727 = vmatprep.subr.mxu0 0.0
        %728 = vmatpush1.msra.mxu0 0.0
        %729 = vmatprep.subr.mxu0 0.0
        %730 = vmatpush1.msra.mxu0 0.0
        %731 = vmatprep.subr.mxu0 0.0
        %732 = vmatpush1.msra.mxu0 0.0
        %733 = vmatprep.subr.mxu0 0.0
        %734 = vmatpush1.msra.mxu0 0.0
        %735 = vmatprep.subr.mxu0 0.0
        %736 = vmatpush1.msra.mxu0 0.0
        %737 = vmatprep.subr.mxu0 0.0
        %738 = vmatpush1.msra.mxu0 0.0
        %739 = vmatprep.subr.mxu0 0.0
        %740 = vmatpush1.msra.mxu0 0.0
        %741 = vmatprep.subr.mxu0 0.0
        %742 = vmatpush1.msra.mxu0 0.0
        %743 = vmatprep.subr.mxu0 0.0
        %744 = vmatpush1.msra.mxu0 0.0
        %745 = vmatprep.subr.mxu0 0.0
        %746 = vmatpush1.msra.mxu0 0.0
        %747 = vmatprep.subr.mxu0 0.0
        %748 = vmatpush1.msra.mxu0 0.0
        %749 = vmatprep.subr.mxu0 0.0
        %750 = vmatpush1.msra.mxu0 0.0
        %751 = vmatprep.mubr.f32.mxu0 0.0
        %752 = vmatmul.mubr.f32.gmra.mrb[0].mxu0 %v685
        %v753 = vpop.f32.mrb[0].mxu0
        %v754 = vadd.f32 0.0, %v753
        %v755 = vpop.f32.mrb[0].mxu0
        %756 = vdwg.mxu0
        %v758 = vsel %vm535, %v674, 0
        %760 = vmatprep.subr.mxu0 0.0
        %761 = vmatpush1.msra.mxu0 %v677
        %762 = vmatprep.subr.mxu0 0.0
        %763 = vmatpush1.msra.mxu0 %v678
        %764 = vmatprep.subr.mxu0 0.0
        %765 = vmatpush1.msra.mxu0 0.0
        %766 = vmatprep.subr.mxu0 0.0
        %767 = vmatpush1.msra.mxu0 0.0
        %768 = vmatprep.subr.mxu0 0.0
        %769 = vmatpush1.msra.mxu0 0.0
        %770 = vmatprep.subr.mxu0 0.0
        %771 = vmatpush1.msra.mxu0 0.0
        %772 = vmatprep.subr.mxu0 0.0
        %773 = vmatpush1.msra.mxu0 0.0
        %774 = vmatprep.subr.mxu0 0.0
        %775 = vmatpush1.msra.mxu0 0.0
        %776 = vmatprep.subr.mxu0 0.0
        %777 = vmatpush1.msra.mxu0 0.0
        %778 = vmatprep.subr.mxu0 0.0
        %779 = vmatpush1.msra.mxu0 0.0
        %780 = vmatprep.subr.mxu0 0.0
        %781 = vmatpush1.msra.mxu0 0.0
        %782 = vmatprep.subr.mxu0 0.0
        %783 = vmatpush1.msra.mxu0 0.0
        %784 = vmatprep.subr.mxu0 0.0
        %785 = vmatpush1.msra.mxu0 0.0
        %786 = vmatprep.subr.mxu0 0.0
        %787 = vmatpush1.msra.mxu0 0.0
        %788 = vmatprep.subr.mxu0 0.0
        %789 = vmatpush1.msra.mxu0 0.0
        %790 = vmatprep.subr.mxu0 0.0
        %791 = vmatpush1.msra.mxu0 0.0
        %792 = vmatprep.subr.mxu0 0.0
        %793 = vmatpush1.msra.mxu0 0.0
        %794 = vmatprep.subr.mxu0 0.0
        %795 = vmatpush1.msra.mxu0 0.0
        %796 = vmatprep.subr.mxu0 0.0
        %797 = vmatpush1.msra.mxu0 0.0
        %798 = vmatprep.subr.mxu0 0.0
        %799 = vmatpush1.msra.mxu0 0.0
        %800 = vmatprep.subr.mxu0 0.0
        %801 = vmatpush1.msra.mxu0 0.0
        %802 = vmatprep.subr.mxu0 0.0
        %803 = vmatpush1.msra.mxu0 0.0
        %804 = vmatprep.subr.mxu0 0.0
        %805 = vmatpush1.msra.mxu0 0.0
        %806 = vmatprep.subr.mxu0 0.0
        %807 = vmatpush1.msra.mxu0 0.0
        %808 = vmatprep.subr.mxu0 0.0
        %809 = vmatpush1.msra.mxu0 0.0
        %810 = vmatprep.subr.mxu0 0.0
        %811 = vmatpush1.msra.mxu0 0.0
        %812 = vmatprep.subr.mxu0 0.0
        %813 = vmatpush1.msra.mxu0 0.0
        %814 = vmatprep.subr.mxu0 0.0
        %815 = vmatpush1.msra.mxu0 0.0
        %816 = vmatprep.subr.mxu0 0.0
        %817 = vmatpush1.msra.mxu0 0.0
        %818 = vmatprep.subr.mxu0 0.0
        %819 = vmatpush1.msra.mxu0 0.0
        %820 = vmatprep.subr.mxu0 0.0
        %821 = vmatpush1.msra.mxu0 0.0
        %822 = vmatprep.subr.mxu0 0.0
        %823 = vmatpush1.msra.mxu0 0.0
        %824 = vmatprep.mubr.f32.mxu0 0.0
        %825 = vmatmul.mubr.f32.gmra.mrb[0].mxu0 %v758
        %v826 = vpop.f32.mrb[0].mxu0
        %v827 = vadd.f32 %v754, %v826
        %v828 = vpop.f32.mrb[0].mxu0
        %829 = vdwg.mxu0
        %v831 = vlaneseq
        %v832 = vshrl.u32 %v831, 7
        %v833 = vsub.s32 0, %v832
        %v834 = vrot.slane %v683, %v833
        %v836 = vadd.f32 %v827, %v834
        %v837 = vsub.f32 0.0, %v836
        %v838 = vmul.f32 %v837, 1.442695
        %v839 = vpow.pop %v838
        %v840 = vadd.f32 %v839, 1.0
        %v841 = vrcp.pop %v840
        %v842 = vmul.f32 1.0, %v841
        %v843 = vtanh.pop %v836
        %845 = vrot.lane.b32.xlu0 %v676, 32
        %v846 = vpop.permute.xlu0 %845
        %v848 = vmul.f32 %v842, %v846
        %850 = vrot.lane.b32.xlu0 %v843, 64
        %v851 = vpop.permute.xlu0 %850
        %v853 = vmul.f32 %v842, %v851
        %855 = vrot.lane.b32.xlu0 %v853, 32
        %v856 = vpop.permute.xlu0 %855
        %v858 = vadd.f32 %v848, %v856
        %v859 = vtanh.pop %v858
        %861 = vrot.lane.b32.xlu0 %v859, 64
        %v862 = vpop.permute.xlu0 %861
        %v864 = vmul.f32 %v842, %v862
        %v865 = vsel %vm673, 1, 0
        %866 = vset.pattern.permute.xlu0 0
        %867 = vperm.xlu0 %866, %v865
        %v868 = vpop.permute.xlu0 %867
        %vm869 = vcmp.eq.s32.totalorder %v868, 1
        %v870 = vsel %vm869, %v858, %v846
        %871 = vrot.lane.b32.xlu0 %v675, 96
        %v872 = vpop.permute.xlu0 %871
        %v874 = vsel %vm869, %v864, %v872
        %v875 = vsel %vm869, %v864, 0.0
        %877 = vrot.lane.b32.xlu0 %v874, 32
        %v878 = vpop.permute.xlu0 %877
        %880 = vst.msk [vmem:[#allocation4] sm:$0xf] %vm659, %v878
        %882 = vrot.lane.b32.xlu0 %v870, 96
        %v883 = vpop.permute.xlu0 %882
        %885 = vst.msk [vmem:[#allocation5] sm:$0xf] %vm659, %v883
        %887 = vrot.lane.b32.xlu0 %v875, 32
        %v888 = vpop.permute.xlu0 %887
        %890 = vst.msk [vmem:[%s437] sm:$0xf] %vm659, %v888
        %p891 = scmp.lt.s32.totalorder %s24, 11
        %s892 = scalar_select %p891, %s24, 11
        %s893 = smul.addr %s892, 4
        %s894 = scalar_lea.vmem %s9, %s893
        %s895 = ssub.s32 11, %s24
        %p896 = scmp.lt.s32.totalorder %s895, 11
        %s897 = scalar_select %p896, %s895, 11
        %s898 = smul.addr %s897, 4
        %s899 = scalar_lea.vmem %s10, %s898
        // Predicated region
        $region73: #{rnn_forward.2} parent=55 // pred_check
          %p900 = pneg %p243
        $region74: #{rnn_forward.2} parent=55 // pred_check_branch
          %902 = sbr.rel (%p900) target = $region76
        $region75: #{rnn_forward.2} parent=55 // pred_region
          _
        $region76: #{rnn_forward.2} parent=55 // pred_fallthru
          _
        // Predicated region
        $region77: #{rnn_forward.2} parent=55 // pred_check
          %p903 = pneg %p271
        $region78: #{rnn_forward.2} parent=55 // pred_check_branch
          %905 = sbr.rel (%p903) target = $region80
        $region79: #{rnn_forward.2} parent=55 // pred_region
          %s906 = ssub.s32 11, %s24
        $region80: #{rnn_forward.2} parent=55 // pred_fallthru
          _
      $region56: #{rnn_forward.2} parent=5 // pred_fallthru
        _
      %p907 = scmp.le.s32.totalorder 2, %s19
      // Predicated region
      $region81: #{rnn_forward.2} parent=5 // pred_check
        %p908 = pneg %p907
      $region82: #{rnn_forward.2} parent=5 // pred_check_branch
        %910 = sbr.rel (%p908) target = $region84
      $region83: #{rnn_forward.2} parent=5 // pred_region
        %s911 = ssub.s32 %s19, 2
        // Predicated region
        $region85: #{rnn_forward.2} parent=83 // pred_check
          %p912 = pneg %p249
        $region86: #{rnn_forward.2} parent=83 // pred_check_branch
          %914 = sbr.rel (%p912) target = $region88
        $region87: #{rnn_forward.2} parent=83 // pred_region
          %p915 = scmp.lt.s32.totalorder %s25, 11
          %s916 = scalar_select %p915, %s25, 11
          %s917 = smul.addr %s916, 4
          %s918 = scalar_lea.vmem %s9, %s917
        $region88: #{rnn_forward.2} parent=83 // pred_fallthru
          _
        // Predicated region
        $region89: #{rnn_forward.2} parent=83 // pred_check
          %p919 = pneg %p277
        $region90: #{rnn_forward.2} parent=83 // pred_check_branch
          %921 = sbr.rel (%p919) target = $region92
        $region91: #{rnn_forward.2} parent=83 // pred_region
          %s922 = ssub.s32 11, %s25
          %p923 = scmp.lt.s32.totalorder %s922, 11
          %s924 = scalar_select %p923, %s922, 11
          %s925 = smul.addr %s924, 4
          %s926 = scalar_lea.vmem %s10, %s925
        $region92: #{rnn_forward.2} parent=83 // pred_fallthru
          _
      $region84: #{rnn_forward.2} parent=5 // pred_fallthru
        _
    $region6: #{rnn_forward.2} parent=1 // loop_footer
      %s23 = sadd.s32 1, %s19
    $region7: #{rnn_forward.2} parent=1 // loop_footer_branch
      %18 = sbr.rel target = $region3
    $region8: #{rnn_forward.2} parent=1 // loop_exit
      _
    %927 = vsyncpa [#allocation7], 1
    %s928 = scalar_lea.sflag [#allocation7], 1
    %929 = vsyncpa %s928, 1
    %930 = vsyncpa [#allocation9], 1

// kernel: rnn_forward.3
$region0: #{rnn_forward.3}
  #allocation0 [shape = 'u32[]', space=smem, size = 0x4, offset = 0x4, fixed_abs, tag = 'smem constant byte address 0x4 - core index']
  #allocation1 [shape = 'u32[144,128]{1,0:T(1,128)}', space=vmem, size = 0x12000, scoped, tag = 'internal scratch']
  #allocation2 [shape = 'f32[4,32]{1,0:T(4,128)}', space=vmem, size = 0x800, scoped, tag = 'scratch operand']
  #allocation3 [shape = 'f32[4,32]{1,0:T(4,128)}', space=vmem, size = 0x800, scoped, tag = 'scratch operand']
  #allocation4 [shape = 'f32[4,32]{1,0:T(4,128)}', space=vmem, size = 0x800, scoped, tag = 'scratch operand']
  #allocation5 [shape = 'f32[4,32]{1,0:T(4,128)}', space=vmem, size = 0x800, scoped, tag = 'scratch operand']
  %s0 = inlined_call_operand.vmem [shape: s32[4,1], index: 0, kind: input, shape index: {}]
  %s1 = inlined_call_operand.vmem [shape: f32[12,4,64], index: 1, kind: input, shape index: {}, may-alias: {1,2}]
  %s2 = inlined_call_operand.vmem [shape: f32[12,4,64], index: 2, kind: input, shape index: {}, may-alias: {1,2}]
  %s3 = inlined_call_operand.vmem [shape: f32[64,128], index: 3, kind: input, shape index: {}]
  %s4 = inlined_call_operand.vmem [shape: f32[32,128], index: 4, kind: input, shape index: {}]
  %s5 = inlined_call_operand.vmem [shape: f32[1,128], index: 5, kind: input, shape index: {}]
  %s6 = inlined_call_operand.vmem [shape: f32[64,128], index: 6, kind: input, shape index: {}]
  %s7 = inlined_call_operand.vmem [shape: f32[32,128], index: 7, kind: input, shape index: {}]
  %s8 = inlined_call_operand.vmem [shape: f32[1,128], index: 8, kind: input, shape index: {}]
  %s9 = inlined_call_operand.vmem [shape: f32[12,4,32], index: 9, kind: output, shape index: {0}]
  %s10 = inlined_call_operand.vmem [shape: f32[12,4,32], index: 10, kind: output, shape index: {1}]
  %11 = xla_tuple %s9, %s10
  %s12 = sld [smem:[#allocation0]]
  $region81: #{rnn_forward.3} parent=0
    _
  %s14 = ssub.s32 1, %s12
  %s15 = scalar_select 0, %s14, %s12
  loop: start=0, step=1, limit=14
  $region2: #{rnn_forward.3} parent=0 // loop_pre_header
    _
  $region3: #{rnn_forward.3} parent=0 // loop_header
    %s17 = sphi 0, %s21
    %p18 = scmp.ge.s32.totalorder %s17, 14
    %s25 = sphi 0, %s25
    %s27 = sphi 0, %s25
    %s28 = sphi 0, %s27
    %s42 = sphi 0, %s28
    %s48 = sphi 0, %s50
    %s51 = sphi 0, %s48
    %s52 = sphi 0, %s51
    %s68 = sphi 0, %s52
    %s76 = sphi 0, %s78
    %s79 = sphi 0, %s76
    %s80 = sphi 0, %s79
    %s96 = sphi 0, %s80
    %s100 = sphi 0, %s100
    %s102 = sphi 0, %s100
    %s103 = sphi 0, %s102
    %s117 = sphi 0, %s103
    %s121 = sphi 0, %s121
    %s123 = sphi 0, %s121
    %s124 = sphi 0, %s123
    %s138 = sphi 0, %s124
    %s142 = sphi 0, %s142
    %s144 = sphi 0, %s142
    %s145 = sphi 0, %s144
    %s159 = sphi 0, %s145
    %s163 = sphi 0, %s163
    %s165 = sphi 0, %s163
    %s166 = sphi 0, %s165
    %s180 = sphi 0, %s166
    %s184 = sphi 0, %s184
    %s186 = sphi 0, %s184
    %s187 = sphi 0, %s186
    %s201 = sphi 0, %s187
    %s205 = sphi 0, %s205
    %s207 = sphi 0, %s205
    %s208 = sphi 0, %s207
    %s222 = sphi 0, %s208
    %s228 = sphi 0, %s230
    %s231 = sphi 0, %s228
    %s232 = sphi 0, %s231
    %s248 = sphi 0, %s232
    %s256 = sphi 0, %s258
    %s259 = sphi 0, %s256
    %s260 = sphi 0, %s259
    %s276 = sphi 0, %s260
  $region4: #{rnn_forward.3} parent=0 // loop_header_branch
    %20 = sbr.rel (%p18) target = $region8
  $region5: #{rnn_forward.3} parent=0 // loop_body
    %s22 = ssub.s32 %s17, 1
    %s23 = ssub.s32 %s17, 2
    %s24 = sadd.s32 %s17, 1
    %s26 = sadd.s32 %s25, 1
    %p29 = scmp.eq.s32.totalorder %s17, 11
    %p30 = scmp.ne.s32.totalorder %s25, %s27
    %p31 = scmp.eq.s32.totalorder %s17, 0
    %p32 = por %p30, %p31
    %p33 = scmp.ne.s32.totalorder %s25, %s27
    %p34 = scmp.eq.s32.totalorder %s22, 11
    %p35 = por %p33, %p34
    %p36 = scmp.ne.s32.totalorder %s27, %s28
    %p37 = scmp.eq.s32.totalorder %s22, 0
    %p38 = por %p36, %p37
    %p39 = scmp.ne.s32.totalorder %s27, %s28
    %p40 = scmp.eq.s32.totalorder %s23, 11
    %p41 = por %p39, %p40
    %p43 = scmp.ne.s32.totalorder %s28, %s42
    %p44 = scmp.eq.s32.totalorder %s23, 0
    %p45 = por %p43, %p44
    %s46 = ssub.s32 %s17, %s24
    %p47 = scmp.eq.s32.totalorder %s46, 0
    %s49 = sadd.s32 %s48, 1
    %s50 = scalar_select %p47, %s48, %s49
    %p53 = pneg %p47
    %p54 = scmp.eq.s32.totalorder %s17, 11
    %p55 = por %p53, %p54
    %p56 = scmp.ne.s32.totalorder %s48, %s51
    %p57 = scmp.eq.s32.totalorder %s17, 0
    %p58 = por %p56, %p57
    %p59 = scmp.ne.s32.totalorder %s48, %s51
    %p60 = scmp.eq.s32.totalorder %s22, 11
    %p61 = por %p59, %p60
    %p62 = scmp.ne.s32.totalorder %s51, %s52
    %p63 = scmp.eq.s32.totalorder %s22, 0
    %p64 = por %p62, %p63
    %p65 = scmp.ne.s32.totalorder %s51, %s52
    %p66 = scmp.eq.s32.totalorder %s23, 11
    %p67 = por %p65, %p66
    %p69 = scmp.ne.s32.totalorder %s52, %s68
    %p70 = scmp.eq.s32.totalorder %s23, 0
    %p71 = por %p69, %p70
    %s72 = ssub.s32 11, %s17
    %s73 = ssub.s32 11, %s24
    %s74 = ssub.s32 %s72, %s73
    %p75 = scmp.eq.s32.totalorder %s74, 0
    %s77 = sadd.s32 %s76, 1
    %s78 = scalar_select %p75, %s76, %s77
    %p81 = pneg %p75
    %p82 = scmp.eq.s32.totalorder %s17, 11
    %p83 = por %p81, %p82
    %p84 = scmp.ne.s32.totalorder %s76, %s79
    %p85 = scmp.eq.s32.totalorder %s17, 0
    %p86 = por %p84, %p85
    %p87 = scmp.ne.s32.totalorder %s76, %s79
    %p88 = scmp.eq.s32.totalorder %s22, 11
    %p89 = por %p87, %p88
    %p90 = scmp.ne.s32.totalorder %s79, %s80
    %p91 = scmp.eq.s32.totalorder %s22, 0
    %p92 = por %p90, %p91
    %p93 = scmp.ne.s32.totalorder %s79, %s80
    %p94 = scmp.eq.s32.totalorder %s23, 11
    %p95 = por %p93, %p94
    %p97 = scmp.ne.s32.totalorder %s80, %s96
    %p98 = scmp.eq.s32.totalorder %s23, 0
    %p99 = por %p97, %p98
    %s101 = sadd.s32 %s100, 1
    %p104 = scmp.eq.s32.totalorder %s17, 11
    %p105 = scmp.ne.s32.totalorder %s100, %s102
    %p106 = scmp.eq.s32.totalorder %s17, 0
    %p107 = por %p105, %p106
    %p108 = scmp.ne.s32.totalorder %s100, %s102
    %p109 = scmp.eq.s32.totalorder %s22, 11
    %p110 = por %p108, %p109
    %p111 = scmp.ne.s32.totalorder %s102, %s103
    %p112 = scmp.eq.s32.totalorder %s22, 0
    %p113 = por %p111, %p112
    %p114 = scmp.ne.s32.totalorder %s102, %s103
    %p115 = scmp.eq.s32.totalorder %s23, 11
    %p116 = por %p114, %p115
    %p118 = scmp.ne.s32.totalorder %s103, %s117
    %p119 = scmp.eq.s32.totalorder %s23, 0
    %p120 = por %p118, %p119
    %s122 = sadd.s32 %s121, 1
    %p125 = scmp.eq.s32.totalorder %s17, 11
    %p126 = scmp.ne.s32.totalorder %s121, %s123
    %p127 = scmp.eq.s32.totalorder %s17, 0
    %p128 = por %p126, %p127
    %p129 = scmp.ne.s32.totalorder %s121, %s123
    %p130 = scmp.eq.s32.totalorder %s22, 11
    %p131 = por %p129, %p130
    %p132 = scmp.ne.s32.totalorder %s123, %s124
    %p133 = scmp.eq.s32.totalorder %s22, 0
    %p134 = por %p132, %p133
    %p135 = scmp.ne.s32.totalorder %s123, %s124
    %p136 = scmp.eq.s32.totalorder %s23, 11
    %p137 = por %p135, %p136
    %p139 = scmp.ne.s32.totalorder %s124, %s138
    %p140 = scmp.eq.s32.totalorder %s23, 0
    %p141 = por %p139, %p140
    %s143 = sadd.s32 %s142, 1
    %p146 = scmp.eq.s32.totalorder %s17, 11
    %p147 = scmp.ne.s32.totalorder %s142, %s144
    %p148 = scmp.eq.s32.totalorder %s17, 0
    %p149 = por %p147, %p148
    %p150 = scmp.ne.s32.totalorder %s142, %s144
    %p151 = scmp.eq.s32.totalorder %s22, 11
    %p152 = por %p150, %p151
    %p153 = scmp.ne.s32.totalorder %s144, %s145
    %p154 = scmp.eq.s32.totalorder %s22, 0
    %p155 = por %p153, %p154
    %p156 = scmp.ne.s32.totalorder %s144, %s145
    %p157 = scmp.eq.s32.totalorder %s23, 11
    %p158 = por %p156, %p157
    %p160 = scmp.ne.s32.totalorder %s145, %s159
    %p161 = scmp.eq.s32.totalorder %s23, 0
    %p162 = por %p160, %p161
    %s164 = sadd.s32 %s163, 1
    %p167 = scmp.eq.s32.totalorder %s17, 11
    %p168 = scmp.ne.s32.totalorder %s163, %s165
    %p169 = scmp.eq.s32.totalorder %s17, 0
    %p170 = por %p168, %p169
    %p171 = scmp.ne.s32.totalorder %s163, %s165
    %p172 = scmp.eq.s32.totalorder %s22, 11
    %p173 = por %p171, %p172
    %p174 = scmp.ne.s32.totalorder %s165, %s166
    %p175 = scmp.eq.s32.totalorder %s22, 0
    %p176 = por %p174, %p175
    %p177 = scmp.ne.s32.totalorder %s165, %s166
    %p178 = scmp.eq.s32.totalorder %s23, 11
    %p179 = por %p177, %p178
    %p181 = scmp.ne.s32.totalorder %s166, %s180
    %p182 = scmp.eq.s32.totalorder %s23, 0
    %p183 = por %p181, %p182
    %s185 = sadd.s32 %s184, 1
    %p188 = scmp.eq.s32.totalorder %s17, 11
    %p189 = scmp.ne.s32.totalorder %s184, %s186
    %p190 = scmp.eq.s32.totalorder %s17, 0
    %p191 = por %p189, %p190
    %p192 = scmp.ne.s32.totalorder %s184, %s186
    %p193 = scmp.eq.s32.totalorder %s22, 11
    %p194 = por %p192, %p193
    %p195 = scmp.ne.s32.totalorder %s186, %s187
    %p196 = scmp.eq.s32.totalorder %s22, 0
    %p197 = por %p195, %p196
    %p198 = scmp.ne.s32.totalorder %s186, %s187
    %p199 = scmp.eq.s32.totalorder %s23, 11
    %p200 = por %p198, %p199
    %p202 = scmp.ne.s32.totalorder %s187, %s201
    %p203 = scmp.eq.s32.totalorder %s23, 0
    %p204 = por %p202, %p203
    %s206 = sadd.s32 %s205, 1
    %p209 = scmp.eq.s32.totalorder %s17, 11
    %p210 = scmp.ne.s32.totalorder %s205, %s207
    %p211 = scmp.eq.s32.totalorder %s17, 0
    %p212 = por %p210, %p211
    %p213 = scmp.ne.s32.totalorder %s205, %s207
    %p214 = scmp.eq.s32.totalorder %s22, 11
    %p215 = por %p213, %p214
    %p216 = scmp.ne.s32.totalorder %s207, %s208
    %p217 = scmp.eq.s32.totalorder %s22, 0
    %p218 = por %p216, %p217
    %p219 = scmp.ne.s32.totalorder %s207, %s208
    %p220 = scmp.eq.s32.totalorder %s23, 11
    %p221 = por %p219, %p220
    %p223 = scmp.ne.s32.totalorder %s208, %s222
    %p224 = scmp.eq.s32.totalorder %s23, 0
    %p225 = por %p223, %p224
    %s226 = ssub.s32 %s17, %s24
    %p227 = scmp.eq.s32.totalorder %s226, 0
    %s229 = sadd.s32 %s228, 1
    %s230 = scalar_select %p227, %s228, %s229
    %p233 = pneg %p227
    %p234 = scmp.eq.s32.totalorder %s17, 11
    %p235 = por %p233, %p234
    %p236 = scmp.ne.s32.totalorder %s228, %s231
    %p237 = scmp.eq.s32.totalorder %s17, 0
    %p238 = por %p236, %p237
    %p239 = scmp.ne.s32.totalorder %s228, %s231
    %p240 = scmp.eq.s32.totalorder %s22, 11
    %p241 = por %p239, %p240
    %p242 = scmp.ne.s32.totalorder %s231, %s232
    %p243 = scmp.eq.s32.totalorder %s22, 0
    %p244 = por %p242, %p243
    %p245 = scmp.ne.s32.totalorder %s231, %s232
    %p246 = scmp.eq.s32.totalorder %s23, 11
    %p247 = por %p245, %p246
    %p249 = scmp.ne.s32.totalorder %s232, %s248
    %p250 = scmp.eq.s32.totalorder %s23, 0
    %p251 = por %p249, %p250
    %s252 = ssub.s32 11, %s17
    %s253 = ssub.s32 11, %s24
    %s254 = ssub.s32 %s252, %s253
    %p255 = scmp.eq.s32.totalorder %s254, 0
    %s257 = sadd.s32 %s256, 1
    %s258 = scalar_select %p255, %s256, %s257
    %p261 = pneg %p255
    %p262 = scmp.eq.s32.totalorder %s17, 11
    %p263 = por %p261, %p262
    %p264 = scmp.ne.s32.totalorder %s256, %s259
    %p265 = scmp.eq.s32.totalorder %s17, 0
    %p266 = por %p264, %p265
    %p267 = scmp.ne.s32.totalorder %s256, %s259
    %p268 = scmp.eq.s32.totalorder %s22, 11
    %p269 = por %p267, %p268
    %p270 = scmp.ne.s32.totalorder %s259, %s260
    %p271 = scmp.eq.s32.totalorder %s22, 0
    %p272 = por %p270, %p271
    %p273 = scmp.ne.s32.totalorder %s259, %s260
    %p274 = scmp.eq.s32.totalorder %s23, 11
    %p275 = por %p273, %p274
    %p277 = scmp.ne.s32.totalorder %s260, %s276
    %p278 = scmp.eq.s32.totalorder %s23, 0
    %p279 = por %p277, %p278
    %p280 = scmp.le.s32.totalorder 1, %s17
    %p281 = scmp.lt.s32.totalorder %s17, 13
    %p282 = pnand %p280, %p281
    %p283 = pneg %p282
    // Predicated region
    $region9: #{rnn_forward.3} parent=5 // pred_check
      _
    $region10: #{rnn_forward.3} parent=5 // pred_check_branch
      %285 = sbr.rel (%p282) target = $region12
    $region11: #{rnn_forward.3} parent=5 // pred_region
      %s286 = ssub.s32 %s17, 1
      // Predicated region
      $region13: #{rnn_forward.3} parent=11 // pred_check
        %p287 = pneg %p38
      $region14: #{rnn_forward.3} parent=11 // pred_check_branch
        %289 = sbr.rel (%p287) target = $region16
      $region15: #{rnn_forward.3} parent=11 // pred_region
        _
      $region16: #{rnn_forward.3} parent=11 // pred_fallthru
        _
      // Predicated region
      $region17: #{rnn_forward.3} parent=11 // pred_check
        %p290 = pneg %p113
      $region18: #{rnn_forward.3} parent=11 // pred_check_branch
        %292 = sbr.rel (%p290) target = $region20
      $region19: #{rnn_forward.3} parent=11 // pred_region
        _
      $region20: #{rnn_forward.3} parent=11 // pred_fallthru
        _
      // Predicated region
      $region21: #{rnn_forward.3} parent=11 // pred_check
        %p293 = pneg %p134
      $region22: #{rnn_forward.3} parent=11 // pred_check_branch
        %295 = sbr.rel (%p293) target = $region24
      $region23: #{rnn_forward.3} parent=11 // pred_region
        _
      $region24: #{rnn_forward.3} parent=11 // pred_fallthru
        _
      // Predicated region
      $region25: #{rnn_forward.3} parent=11 // pred_check
        %p296 = pneg %p155
      $region26: #{rnn_forward.3} parent=11 // pred_check_branch
        %298 = sbr.rel (%p296) target = $region28
      $region27: #{rnn_forward.3} parent=11 // pred_region
        _
      $region28: #{rnn_forward.3} parent=11 // pred_fallthru
        _
      // Predicated region
      $region29: #{rnn_forward.3} parent=11 // pred_check
        %p299 = pneg %p176
      $region30: #{rnn_forward.3} parent=11 // pred_check_branch
        %301 = sbr.rel (%p299) target = $region32
      $region31: #{rnn_forward.3} parent=11 // pred_region
        _
      $region32: #{rnn_forward.3} parent=11 // pred_fallthru
        _
      // Predicated region
      $region33: #{rnn_forward.3} parent=11 // pred_check
        %p302 = pneg %p197
      $region34: #{rnn_forward.3} parent=11 // pred_check_branch
        %304 = sbr.rel (%p302) target = $region36
      $region35: #{rnn_forward.3} parent=11 // pred_region
        _
      $region36: #{rnn_forward.3} parent=11 // pred_fallthru
        _
      // Predicated region
      $region37: #{rnn_forward.3} parent=11 // pred_check
        %p305 = pneg %p218
      $region38: #{rnn_forward.3} parent=11 // pred_check_branch
        %307 = sbr.rel (%p305) target = $region40
      $region39: #{rnn_forward.3} parent=11 // pred_region
        _
      $region40: #{rnn_forward.3} parent=11 // pred_fallthru
        _
    $region12: #{rnn_forward.3} parent=5 // pred_fallthru
      _
    %p308 = scmp.lt.s32.totalorder %s17, 12
    // Predicated region
    $region41: #{rnn_forward.3} parent=5 // pred_check
      %p309 = pneg %p308
    $region42: #{rnn_forward.3} parent=5 // pred_check_branch
      %311 = sbr.rel (%p309) target = $region44
    $region43: #{rnn_forward.3} parent=5 // pred_region
      // Predicated region
      $region45: #{rnn_forward.3} parent=43 // pred_check
        %p312 = pneg %p58
      $region46: #{rnn_forward.3} parent=43 // pred_check_branch
        %314 = sbr.rel (%p312) target = $region48
      $region47: #{rnn_forward.3} parent=43 // pred_region
        %p315 = scmp.lt.s32.totalorder %s17, 11
        %s316 = scalar_select %p315, %s17, 11
        %s317 = smul.addr %s316, 4
        %s318 = scalar_lea.vmem %s1, %s317
      $region48: #{rnn_forward.3} parent=43 // pred_fallthru
        _
      // Predicated region
      $region49: #{rnn_forward.3} parent=43 // pred_check
        %p319 = pneg %p86
      $region50: #{rnn_forward.3} parent=43 // pred_check_branch
        %321 = sbr.rel (%p319) target = $region52
      $region51: #{rnn_forward.3} parent=43 // pred_region
        %s322 = ssub.s32 11, %s17
        %p323 = scmp.lt.s32.totalorder %s322, 11
        %s324 = scalar_select %p323, %s322, 11
        %s325 = smul.addr %s324, 4
        %s326 = scalar_lea.vmem %s2, %s325
        %s327 = ssub.s32 11, %s17
      $region52: #{rnn_forward.3} parent=43 // pred_fallthru
        _
    $region44: #{rnn_forward.3} parent=5 // pred_fallthru
      _
    %p328 = scmp.le.s32.totalorder 1, %s17
    %p329 = scmp.lt.s32.totalorder %s17, 13
    %p330 = pnand %p328, %p329
    %p331 = pneg %p330
    // Predicated region
    $region53: #{rnn_forward.3} parent=5 // pred_check
      _
    $region54: #{rnn_forward.3} parent=5 // pred_check_branch
      %333 = sbr.rel (%p330) target = $region56
    $region55: #{rnn_forward.3} parent=5 // pred_region
      %s334 = ssub.s32 %s17, 1
      %p335 = pneg %p38
      %p336 = pneg %p35
      %p337 = scmp.lt.s32.totalorder %s22, 11
      %s338 = scalar_select %p337, %s22, 11
      %s339 = smul.addr %s338, 4
      %s340 = scalar_lea.vmem %s1, %s339
      %p341 = pneg %p64
      %p342 = pneg %p61
      %s343 = ssub.s32 11, %s22
      %p344 = scmp.lt.s32.totalorder %s343, 11
      %s345 = scalar_select %p344, %s343, 11
      %s346 = smul.addr %s345, 4
      %s347 = scalar_lea.vmem %s2, %s346
      %p348 = pneg %p92
      %p349 = pneg %p89
      %p350 = pneg %p113
      %p351 = pneg %p110
      %p352 = pneg %p134
      %p353 = pneg %p131
      %p354 = pneg %p155
      %p355 = pneg %p152
      %p356 = pneg %p176
      %p357 = pneg %p173
      %p358 = pneg %p197
      %p359 = pneg %p194
      %p360 = pneg %p218
      %p361 = pneg %p215
      %p362 = pneg %p244
      %p363 = pneg %p241
      %p364 = scmp.lt.s32.totalorder %s22, 11
      %s365 = scalar_select %p364, %s22, 11
      %s366 = smul.addr %s365, 4
      %s367 = scalar_lea.vmem %s9, %s366
      %p368 = pneg %p272
      %p369 = pneg %p269
      %s370 = ssub.s32 11, %s22
      %p371 = scmp.lt.s32.totalorder %s370, 11
      %s372 = scalar_select %p371, %s370, 11
      %s373 = smul.addr %s372, 4
      %s374 = scalar_lea.vmem %s10, %s373
      %p375 = scmp.lt.s32.totalorder %s22, 11
      %s376 = scalar_select %p375, %s22, 11
      %s377 = smul.addr %s376, 4
      %s378 = scalar_lea.vmem %s1, %s377
      %s379 = ssub.s32 11, %s22
      %p380 = scmp.lt.s32.totalorder %s379, 11
      %s381 = scalar_select %p380, %s379, 11
      %s382 = smul.addr %s381, 4
      %s383 = scalar_lea.vmem %s2, %s382
      %s384 = ssub.s32 11, %s22
      %p385 = scmp.lt.s32.totalorder %s22, 11
      %s386 = scalar_select %p385, %s22, 11
      %s387 = smul.addr %s386, 4
      %s388 = scalar_lea.vmem %s9, %s387
      %s389 = ssub.s32 11, %s22
      %p390 = scmp.lt.s32.totalorder %s389, 11
      %s391 = scalar_select %p390, %s389, 11
      %s392 = smul.addr %s391, 4
      %s393 = scalar_lea.vmem %s10, %s392
      %s394 = ssub.s32 11, %s22
      %p395 = scmp.eq.s32.totalorder %s22, 0
      // Predicated region
      $region57: #{rnn_forward.3} parent=55 // pred_check
        %p396 = pneg %p395
      $region58: #{rnn_forward.3} parent=55 // pred_check_branch
        %398 = sbr.rel (%p396) target = $region60
      $region59: #{rnn_forward.3} parent=55 // pred_region
        %vm399 = vcmask 257024
        %400 = vst.msk [vmem:[#allocation2] sm:$0xf] %vm399, 0.0
        %401 = vst.msk [vmem:[#allocation3] sm:$0xf] %vm399, 0.0
        %402 = vst.msk [vmem:[#allocation4] sm:$0xf] %vm399, 0.0
        %403 = vst.msk [vmem:[#allocation5] sm:$0xf] %vm399, 0.0
      $region60: #{rnn_forward.3} parent=55 // pred_fallthru
        _
      %v404 = vld [vmem:[%s0] sm:$0xf]
      %v405 = vstv %s22
      %vm406 = vcmp.gt.s32.totalorder %v404, %v405
      %v407 = vld [vmem:[%s378] sm:$0xf]
      %v408 = vld [vmem:[#allocation2] sm:$0xf]
      %v409 = vld [vmem:[#allocation3] sm:$0xf]
      %v410 = vld [vmem:[%s3] sm:$0xff]
      %v411 = vld [vmem:[%s3 + $0x8] sm:$0xff]
      %v412 = vld [vmem:[%s3 + $0x10] sm:$0xff]
      %v413 = vld [vmem:[%s3 + $0x18] sm:$0xff]
      %v414 = vld [vmem:[%s3 + $0x20] sm:$0xff]
      %v415 = vld [vmem:[%s3 + $0x28] sm:$0xff]
      %v416 = vld [vmem:[%s3 + $0x30] sm:$0xff]
      %v417 = vld [vmem:[%s3 + $0x38] sm:$0xff]
      %v418 = vld [vmem:[%s4] sm:$0xff]
      %v419 = vld [vmem:[%s4 + $0x8] sm:$0xff]
      %v420 = vld [vmem:[%s4 + $0x10] sm:$0xff]
      %v421 = vld [vmem:[%s4 + $0x18] sm:$0xff]
      %v422 = vld [vmem:[%s5] sm:$0x1]
      %vm423 = vcmask 261120
      %v425 = vsel %vm423, %v408, 0
      %427 = vmatprep.subr.mxu0 0.0
      %428 = vmatpush1.msra.mxu0 %v418
      %429 = vmatprep.subr.mxu0 0.0
      %430 = vmatpush1.msra.mxu0 %v419
      %431 = vmatprep.subr.mxu0 0.0
      %432 = vmatpush1.msra.mxu0 %v420
      %433 = vmatprep.subr.mxu0 0.0
      %434 = vmatpush1.msra.mxu0 %v421
      %435 = vmatprep.subr.mxu0 0.0
      %436 = vmatpush1.msra.mxu0 0.0
      %437 = vmatprep.subr.mxu0 0.0
      %438 = vmatpush1.msra.mxu0 0.0
      %439 = vmatprep.subr.mxu0 0.0
      %440 = vmatpush1.msra.mxu0 0.0
      %441 = vmatprep.subr.mxu0 0.0
      %442 = vmatpush1.msra.mxu0 0.0
      %443 = vmatprep.subr.mxu0 0.0
      %444 = vmatpush1.msra.mxu0 0.0
      %445 = vmatprep.subr.mxu0 0.0
      %446 = vmatpush1.msra.mxu0 0.0
      %447 = vmatprep.subr.mxu0 0.0
      %448 = vmatpush1.msra.mxu0 0.0
      %449 = vmatprep.subr.mxu0 0.0
      %450 = vmatpush1.msra.mxu0 0.0
      %451 = vmatprep.subr.mxu0 0.0
      %452 = vmatpush1.msra.mxu0 0.0
      %453 = vmatprep.subr.mxu0 0.0
      %454 = vmatpush1.msra.mxu0 0.0
      %455 = vmatprep.subr.mxu0 0.0
      %456 = vmatpush1.msra.mxu0 0.0
      %457 = vmatprep.subr.mxu0 0.0
      %458 = vmatpush1.msra.mxu0 0.0
      %459 = vmatprep.subr.mxu0 0.0
      %460 = vmatpush1.msra.mxu0 0.0
      %461 = vmatprep.subr.mxu0 0.0
      %462 = vmatpush1.msra.mxu0 0.0
      %463 = vmatprep.subr.mxu0 0.0
      %464 = vmatpush1.msra.mxu0 0.0
      %465 = vmatprep.subr.mxu0 0.0
      %466 = vmatpush1.msra.mxu0 0.0
      %467 = vmatprep.subr.mxu0 0.0
      %468 = vmatpush1.msra.mxu0 0.0
      %469 = vmatprep.subr.mxu0 0.0
      %470 = vmatpush1.msra.mxu0 0.0
      %471 = vmatprep.subr.mxu0 0.0
      %472 = vmatpush1.msra.mxu0 0.0
      %473 = vmatprep.subr.mxu0 0.0
      %474 = vmatpush1.msra.mxu0 0.0
      %475 = vmatprep.subr.mxu0 0.0
      %476 = vmatpush1.msra.mxu0 0.0
      %477 = vmatprep.subr.mxu0 0.0
      %478 = vmatpush1.msra.mxu0 0.0
      %479 = vmatprep.subr.mxu0 0.0
      %480 = vmatpush1.msra.mxu0 0.0
      %481 = vmatprep.subr.mxu0 0.0
      %482 = vmatpush1.msra.mxu0 0.0
      %483 = vmatprep.subr.mxu0 0.0
      %484 = vmatpush1.msra.mxu0 0.0
      %485 = vmatprep.subr.mxu0 0.0
      %486 = vmatpush1.msra.mxu0 0.0
      %487 = vmatprep.subr.mxu0 0.0
      %488 = vmatpush1.msra.mxu0 0.0
      %489 = vmatprep.subr.mxu0 0.0
      %490 = vmatpush1.msra.mxu0 0.0
      %491 = vmatprep.mubr.f32.mxu0 0.0
      %492 = vmatmul.mubr.f32.gmra.mrb[0].mxu0 %v425
      %v493 = vpop.f32.mrb[0].mxu0
      %v494 = vadd.f32 0.0, %v493
      %v495 = vpop.f32.mrb[0].mxu0
      %496 = vdwg.mxu0
      %vm497 = vcmask 523264
      %v499 = vsel %vm497, %v407, 0
      %501 = vmatprep.subr.mxu0 0.0
      %502 = vmatpush1.msra.mxu0 %v410
      %503 = vmatprep.subr.mxu0 0.0
      %504 = vmatpush1.msra.mxu0 %v411
      %505 = vmatprep.subr.mxu0 0.0
      %506 = vmatpush1.msra.mxu0 %v412
      %507 = vmatprep.subr.mxu0 0.0
      %508 = vmatpush1.msra.mxu0 %v413
      %509 = vmatprep.subr.mxu0 0.0
      %510 = vmatpush1.msra.mxu0 %v414
      %511 = vmatprep.subr.mxu0 0.0
      %512 = vmatpush1.msra.mxu0 %v415
      %513 = vmatprep.subr.mxu0 0.0
      %514 = vmatpush1.msra.mxu0 %v416
      %515 = vmatprep.subr.mxu0 0.0
      %516 = vmatpush1.msra.mxu0 %v417
      %517 = vmatprep.subr.mxu0 0.0
      %518 = vmatpush1.msra.mxu0 0.0
      %519 = vmatprep.subr.mxu0 0.0
      %520 = vmatpush1.msra.mxu0 0.0
      %521 = vmatprep.subr.mxu0 0.0
      %522 = vmatpush1.msra.mxu0 0.0
      %523 = vmatprep.subr.mxu0 0.0
      %524 = vmatpush1.msra.mxu0 0.0
      %525 = vmatprep.subr.mxu0 0.0
      %526 = vmatpush1.msra.mxu0 0.0
      %527 = vmatprep.subr.mxu0 0.0
      %528 = vmatpush1.msra.mxu0 0.0
      %529 = vmatprep.subr.mxu0 0.0
      %530 = vmatpush1.msra.mxu0 0.0
      %531 = vmatprep.subr.mxu0 0.0
      %532 = vmatpush1.msra.mxu0 0.0
      %533 = vmatprep.subr.mxu0 0.0
      %534 = vmatpush1.msra.mxu0 0.0
      %535 = vmatprep.subr.mxu0 0.0
      %536 = vmatpush1.msra.mxu0 0.0
      %537 = vmatprep.subr.mxu0 0.0
      %538 = vmatpush1.msra.mxu0 0.0
      %539 = vmatprep.subr.mxu0 0.0
      %540 = vmatpush1.msra.mxu0 0.0
      %541 = vmatprep.subr.mxu0 0.0
      %542 = vmatpush1.msra.mxu0 0.0
      %543 = vmatprep.subr.mxu0 0.0
      %544 = vmatpush1.msra.mxu0 0.0
      %545 = vmatprep.subr.mxu0 0.0
      %546 = vmatpush1.msra.mxu0 0.0
      %547 = vmatprep.subr.mxu0 0.0
      %548 = vmatpush1.msra.mxu0 0.0
      %549 = vmatprep.subr.mxu0 0.0
      %550 = vmatpush1.msra.mxu0 0.0
      %551 = vmatprep.subr.mxu0 0.0
      %552 = vmatpush1.msra.mxu0 0.0
      %553 = vmatprep.subr.mxu0 0.0
      %554 = vmatpush1.msra.mxu0 0.0
      %555 = vmatprep.subr.mxu0 0.0
      %556 = vmatpush1.msra.mxu0 0.0
      %557 = vmatprep.subr.mxu0 0.0
      %558 = vmatpush1.msra.mxu0 0.0
      %559 = vmatprep.subr.mxu0 0.0
      %560 = vmatpush1.msra.mxu0 0.0
      %561 = vmatprep.subr.mxu0 0.0
      %562 = vmatpush1.msra.mxu0 0.0
      %563 = vmatprep.subr.mxu0 0.0
      %564 = vmatpush1.msra.mxu0 0.0
      %565 = vmatprep.mubr.f32.mxu0 0.0
      %566 = vmatmul.mubr.f32.gmra.mrb[0].mxu0 %v499
      %v567 = vpop.f32.mrb[0].mxu0
      %v568 = vadd.f32 %v494, %v567
      %v569 = vpop.f32.mrb[0].mxu0
      %570 = vdwg.mxu0
      %v572 = vlaneseq
      %v573 = vshrl.u32 %v572, 7
      %v574 = vsub.s32 0, %v573
      %v575 = vrot.slane %v422, %v574
      %v577 = vadd.f32 %v568, %v575
      %v578 = vsub.f32 0.0, %v577
      %v579 = vmul.f32 %v578, 1.442695
      %v580 = vpow.pop %v579
      %v581 = vadd.f32 %v580, 1.0
      %v582 = vrcp.pop %v581
      %v583 = vmul.f32 1.0, %v582
      %v584 = vtanh.pop %v577
      %586 = vrot.lane.b32.xlu0 %v409, 32
      %v587 = vpop.permute.xlu0 %586
      %v589 = vmul.f32 %v583, %v587
      %591 = vrot.lane.b32.xlu0 %v584, 64
      %v592 = vpop.permute.xlu0 %591
      %v594 = vmul.f32 %v583, %v592
      %596 = vrot.lane.b32.xlu0 %v594, 32
      %v597 = vpop.permute.xlu0 %596
      %v599 = vadd.f32 %v589, %v597
      %v600 = vtanh.pop %v599
      %602 = vrot.lane.b32.xlu0 %v600, 64
      %v603 = vpop.permute.xlu0 %602
      %v605 = vmul.f32 %v583, %v603
      %v606 = vsel %vm406, 1, 0
      %607 = vset.pattern.permute.xlu0 0
      %608 = vperm.xlu0 %607, %v606
      %v609 = vpop.permute.xlu0 %608
      %vm610 = vcmp.eq.s32.totalorder %v609, 1
      %v611 = vsel %vm610, %v599, %v587
      %612 = vrot.lane.b32.xlu0 %v408, 96
      %v613 = vpop.permute.xlu0 %612
      %v615 = vsel %vm610, %v605, %v613
      %v616 = vsel %vm610, %v605, 0.0
      %618 = vrot.lane.b32.xlu0 %v615, 32
      %v619 = vpop.permute.xlu0 %618
      %vm621 = vcmask 257024
      %622 = vst.msk [vmem:[#allocation2] sm:$0xf] %vm621, %v619
      %624 = vrot.lane.b32.xlu0 %v611, 96
      %v625 = vpop.permute.xlu0 %624
      %627 = vst.msk [vmem:[#allocation3] sm:$0xf] %vm621, %v625
      %629 = vrot.lane.b32.xlu0 %v616, 32
      %v630 = vpop.permute.xlu0 %629
      %632 = vst.msk [vmem:[%s388] sm:$0xf] %vm621, %v630
      %s633 = ssub.s32 11, %s22
      %v634 = vstv %s633
      %vm635 = vcmp.gt.s32.totalorder %v404, %v634
      %v636 = vld [vmem:[%s383] sm:$0xf]
      %v637 = vld [vmem:[#allocation4] sm:$0xf]
      %v638 = vld [vmem:[#allocation5] sm:$0xf]
      %v639 = vld [vmem:[%s6] sm:$0xff]
      %v640 = vld [vmem:[%s6 + $0x8] sm:$0xff]
      %v641 = vld [vmem:[%s6 + $0x10] sm:$0xff]
      %v642 = vld [vmem:[%s6 + $0x18] sm:$0xff]
      %v643 = vld [vmem:[%s6 + $0x20] sm:$0xff]
      %v644 = vld [vmem:[%s6 + $0x28] sm:$0xff]
      %v645 = vld [vmem:[%s6 + $0x30] sm:$0xff]
      %v646 = vld [vmem:[%s6 + $0x38] sm:$0xff]
      %v647 = vld [vmem:[%s7] sm:$0xff]
      %v648 = vld [vmem:[%s7 + $0x8] sm:$0xff]
      %v649 = vld [vmem:[%s7 + $0x10] sm:$0xff]
      %v650 = vld [vmem:[%s7 + $0x18] sm:$0xff]
      %v651 = vld [vmem:[%s8] sm:$0x1]
      %v653 = vsel %vm423, %v637, 0
      %655 = vmatprep.subr.mxu0 0.0
      %656 = vmatpush1.msra.mxu0 %v647
      %657 = vmatprep.subr.mxu0 0.0
      %658 = vmatpush1.msra.mxu0 %v648
      %659 = vmatprep.subr.mxu0 0.0
      %660 = vmatpush1.msra.mxu0 %v649
      %661 = vmatprep.subr.mxu0 0.0
      %662 = vmatpush1.msra.mxu0 %v650
      %663 = vmatprep.subr.mxu0 0.0
      %664 = vmatpush1.msra.mxu0 0.0
      %665 = vmatprep.subr.mxu0 0.0
      %666 = vmatpush1.msra.mxu0 0.0
      %667 = vmatprep.subr.mxu0 0.0
      %668 = vmatpush1.msra.mxu0 0.0
      %669 = vmatprep.subr.mxu0 0.0
      %670 = vmatpush1.msra.mxu0 0.0
      %671 = vmatprep.subr.mxu0 0.0
      %672 = vmatpush1.msra.mxu0 0.0
      %673 = vmatprep.subr.mxu0 0.0
      %674 = vmatpush1.msra.mxu0 0.0
      %675 = vmatprep.subr.mxu0 0.0
      %676 = vmatpush1.msra.mxu0 0.0
      %677 = vmatprep.subr.mxu0 0.0
      %678 = vmatpush1.msra.mxu0 0.0
      %679 = vmatprep.subr.mxu0 0.0
      %680 = vmatpush1.msra.mxu0 0.0
      %681 = vmatprep.subr.mxu0 0.0
      %682 = vmatpush1.msra.mxu0 0.0
      %683 = vmatprep.subr.mxu0 0.0
      %684 = vmatpush1.msra.mxu0 0.0
      %685 = vmatprep.subr.mxu0 0.0
      %686 = vmatpush1.msra.mxu0 0.0
      %687 = vmatprep.subr.mxu0 0.0
      %688 = vmatpush1.msra.mxu0 0.0
      %689 = vmatprep.subr.mxu0 0.0
      %690 = vmatpush1.msra.mxu0 0.0
      %691 = vmatprep.subr.mxu0 0.0
      %692 = vmatpush1.msra.mxu0 0.0
      %693 = vmatprep.subr.mxu0 0.0
      %694 = vmatpush1.msra.mxu0 0.0
      %695 = vmatprep.subr.mxu0 0.0
      %696 = vmatpush1.msra.mxu0 0.0
      %697 = vmatprep.subr.mxu0 0.0
      %698 = vmatpush1.msra.mxu0 0.0
      %699 = vmatprep.subr.mxu0 0.0
      %700 = vmatpush1.msra.mxu0 0.0
      %701 = vmatprep.subr.mxu0 0.0
      %702 = vmatpush1.msra.mxu0 0.0
      %703 = vmatprep.subr.mxu0 0.0
      %704 = vmatpush1.msra.mxu0 0.0
      %705 = vmatprep.subr.mxu0 0.0
      %706 = vmatpush1.msra.mxu0 0.0
      %707 = vmatprep.subr.mxu0 0.0
      %708 = vmatpush1.msra.mxu0 0.0
      %709 = vmatprep.subr.mxu0 0.0
      %710 = vmatpush1.msra.mxu0 0.0
      %711 = vmatprep.subr.mxu0 0.0
      %712 = vmatpush1.msra.mxu0 0.0
      %713 = vmatprep.subr.mxu0 0.0
      %714 = vmatpush1.msra.mxu0 0.0
      %715 = vmatprep.subr.mxu0 0.0
      %716 = vmatpush1.msra.mxu0 0.0
      %717 = vmatprep.subr.mxu0 0.0
      %718 = vmatpush1.msra.mxu0 0.0
      %719 = vmatprep.mubr.f32.mxu0 0.0
      %720 = vmatmul.mubr.f32.gmra.mrb[0].mxu0 %v653
      %v721 = vpop.f32.mrb[0].mxu0
      %v722 = vadd.f32 0.0, %v721
      %v723 = vpop.f32.mrb[0].mxu0
      %724 = vdwg.mxu0
      %v726 = vsel %vm497, %v636, 0
      %728 = vmatprep.subr.mxu0 0.0
      %729 = vmatpush1.msra.mxu0 %v639
      %730 = vmatprep.subr.mxu0 0.0
      %731 = vmatpush1.msra.mxu0 %v640
      %732 = vmatprep.subr.mxu0 0.0
      %733 = vmatpush1.msra.mxu0 %v641
      %734 = vmatprep.subr.mxu0 0.0
      %735 = vmatpush1.msra.mxu0 %v642
      %736 = vmatprep.subr.mxu0 0.0
      %737 = vmatpush1.msra.mxu0 %v643
      %738 = vmatprep.subr.mxu0 0.0
      %739 = vmatpush1.msra.mxu0 %v644
      %740 = vmatprep.subr.mxu0 0.0
      %741 = vmatpush1.msra.mxu0 %v645
      %742 = vmatprep.subr.mxu0 0.0
      %743 = vmatpush1.msra.mxu0 %v646
      %744 = vmatprep.subr.mxu0 0.0
      %745 = vmatpush1.msra.mxu0 0.0
      %746 = vmatprep.subr.mxu0 0.0
      %747 = vmatpush1.msra.mxu0 0.0
      %748 = vmatprep.subr.mxu0 0.0
      %749 = vmatpush1.msra.mxu0 0.0
      %750 = vmatprep.subr.mxu0 0.0
      %751 = vmatpush1.msra.mxu0 0.0
      %752 = vmatprep.subr.mxu0 0.0
      %753 = vmatpush1.msra.mxu0 0.0
      %754 = vmatprep.subr.mxu0 0.0
      %755 = vmatpush1.msra.mxu0 0.0
      %756 = vmatprep.subr.mxu0 0.0
      %757 = vmatpush1.msra.mxu0 0.0
      %758 = vmatprep.subr.mxu0 0.0
      %759 = vmatpush1.msra.mxu0 0.0
      %760 = vmatprep.subr.mxu0 0.0
      %761 = vmatpush1.msra.mxu0 0.0
      %762 = vmatprep.subr.mxu0 0.0
      %763 = vmatpush1.msra.mxu0 0.0
      %764 = vmatprep.subr.mxu0 0.0
      %765 = vmatpush1.msra.mxu0 0.0
      %766 = vmatprep.subr.mxu0 0.0
      %767 = vmatpush1.msra.mxu0 0.0
      %768 = vmatprep.subr.mxu0 0.0
      %769 = vmatpush1.msra.mxu0 0.0
      %770 = vmatprep.subr.mxu0 0.0
      %771 = vmatpush1.msra.mxu0 0.0
      %772 = vmatprep.subr.mxu0 0.0
      %773 = vmatpush1.msra.mxu0 0.0
      %774 = vmatprep.subr.mxu0 0.0
      %775 = vmatpush1.msra.mxu0 0.0
      %776 = vmatprep.subr.mxu0 0.0
      %777 = vmatpush1.msra.mxu0 0.0
      %778 = vmatprep.subr.mxu0 0.0
      %779 = vmatpush1.msra.mxu0 0.0
      %780 = vmatprep.subr.mxu0 0.0
      %781 = vmatpush1.msra.mxu0 0.0
      %782 = vmatprep.subr.mxu0 0.0
      %783 = vmatpush1.msra.mxu0 0.0
      %784 = vmatprep.subr.mxu0 0.0
      %785 = vmatpush1.msra.mxu0 0.0
      %786 = vmatprep.subr.mxu0 0.0
      %787 = vmatpush1.msra.mxu0 0.0
      %788 = vmatprep.subr.mxu0 0.0
      %789 = vmatpush1.msra.mxu0 0.0
      %790 = vmatprep.subr.mxu0 0.0
      %791 = vmatpush1.msra.mxu0 0.0
      %792 = vmatprep.mubr.f32.mxu0 0.0
      %793 = vmatmul.mubr.f32.gmra.mrb[0].mxu0 %v726
      %v794 = vpop.f32.mrb[0].mxu0
      %v795 = vadd.f32 %v722, %v794
      %v796 = vpop.f32.mrb[0].mxu0
      %797 = vdwg.mxu0
      %v799 = vlaneseq
      %v800 = vshrl.u32 %v799, 7
      %v801 = vsub.s32 0, %v800
      %v802 = vrot.slane %v651, %v801
      %v804 = vadd.f32 %v795, %v802
      %v805 = vsub.f32 0.0, %v804
      %v806 = vmul.f32 %v805, 1.442695
      %v807 = vpow.pop %v806
      %v808 = vadd.f32 %v807, 1.0
      %v809 = vrcp.pop %v808
      %v810 = vmul.f32 1.0, %v809
      %v811 = vtanh.pop %v804
      %813 = vrot.lane.b32.xlu0 %v638, 32
      %v814 = vpop.permute.xlu0 %813
      %v816 = vmul.f32 %v810, %v814
      %818 = vrot.lane.b32.xlu0 %v811, 64
      %v819 = vpop.permute.xlu0 %818
      %v821 = vmul.f32 %v810, %v819
      %823 = vrot.lane.b32.xlu0 %v821, 32
      %v824 = vpop.permute.xlu0 %823
      %v826 = vadd.f32 %v816, %v824
      %v827 = vtanh.pop %v826
      %829 = vrot.lane.b32.xlu0 %v827, 64
      %v830 = vpop.permute.xlu0 %829
      %v832 = vmul.f32 %v810, %v830
      %v833 = vsel %vm635, 1, 0
      %834 = vset.pattern.permute.xlu0 0
      %835 = vperm.xlu0 %834, %v833
      %v836 = vpop.permute.xlu0 %835
      %vm837 = vcmp.eq.s32.totalorder %v836, 1
      %v838 = vsel %vm837, %v826, %v814
      %839 = vrot.lane.b32.xlu0 %v637, 96
      %v840 = vpop.permute.xlu0 %839
      %v842 = vsel %vm837, %v832, %v840
      %v843 = vsel %vm837, %v832, 0.0
      %845 = vrot.lane.b32.xlu0 %v842, 32
      %v846 = vpop.permute.xlu0 %845
      %848 = vst.msk [vmem:[#allocation4] sm:$0xf] %vm621, %v846
      %850 = vrot.lane.b32.xlu0 %v838, 96
      %v851 = vpop.permute.xlu0 %850
      %853 = vst.msk [vmem:[#allocation5] sm:$0xf] %vm621, %v851
      %855 = vrot.lane.b32.xlu0 %v843, 32
      %v856 = vpop.permute.xlu0 %855
      %858 = vst.msk [vmem:[%s393] sm:$0xf] %vm621, %v856
      %p859 = scmp.lt.s32.totalorder %s22, 11
      %s860 = scalar_select %p859, %s22, 11
      %s861 = smul.addr %s860, 4
      %s862 = scalar_lea.vmem %s9, %s861
      %s863 = ssub.s32 11, %s22
      %p864 = scmp.lt.s32.totalorder %s863, 11
      %s865 = scalar_select %p864, %s863, 11
      %s866 = smul.addr %s865, 4
      %s867 = scalar_lea.vmem %s10, %s866
      // Predicated region
      $region61: #{rnn_forward.3} parent=55 // pred_check
        %p868 = pneg %p241
      $region62: #{rnn_forward.3} parent=55 // pred_check_branch
        %870 = sbr.rel (%p868) target = $region64
      $region63: #{rnn_forward.3} parent=55 // pred_region
        _
      $region64: #{rnn_forward.3} parent=55 // pred_fallthru
        _
      // Predicated region
      $region65: #{rnn_forward.3} parent=55 // pred_check
        %p871 = pneg %p269
      $region66: #{rnn_forward.3} parent=55 // pred_check_branch
        %873 = sbr.rel (%p871) target = $region68
      $region67: #{rnn_forward.3} parent=55 // pred_region
        %s874 = ssub.s32 11, %s22
      $region68: #{rnn_forward.3} parent=55 // pred_fallthru
        _
    $region56: #{rnn_forward.3} parent=5 // pred_fallthru
      _
    %p875 = scmp.le.s32.totalorder 2, %s17
    // Predicated region
    $region69: #{rnn_forward.3} parent=5 // pred_check
      %p876 = pneg %p875
    $region70: #{rnn_forward.3} parent=5 // pred_check_branch
      %878 = sbr.rel (%p876) target = $region72
    $region71: #{rnn_forward.3} parent=5 // pred_region
      %s879 = ssub.s32 %s17, 2
      // Predicated region
      $region73: #{rnn_forward.3} parent=71 // pred_check
        %p880 = pneg %p247
      $region74: #{rnn_forward.3} parent=71 // pred_check_branch
        %882 = sbr.rel (%p880) target = $region76
      $region75: #{rnn_forward.3} parent=71 // pred_region
        %p883 = scmp.lt.s32.totalorder %s23, 11
        %s884 = scalar_select %p883, %s23, 11
        %s885 = smul.addr %s884, 4
        %s886 = scalar_lea.vmem %s9, %s885
      $region76: #{rnn_forward.3} parent=71 // pred_fallthru
        _
      // Predicated region
      $region77: #{rnn_forward.3} parent=71 // pred_check
        %p887 = pneg %p275
      $region78: #{rnn_forward.3} parent=71 // pred_check_branch
        %889 = sbr.rel (%p887) target = $region80
      $region79: #{rnn_forward.3} parent=71 // pred_region
        %s890 = ssub.s32 11, %s23
        %p891 = scmp.lt.s32.totalorder %s890, 11
        %s892 = scalar_select %p891, %s890, 11
        %s893 = smul.addr %s892, 4
        %s894 = scalar_lea.vmem %s10, %s893
      $region80: #{rnn_forward.3} parent=71 // pred_fallthru
        _
    $region72: #{rnn_forward.3} parent=5 // pred_fallthru
      _
  $region6: #{rnn_forward.3} parent=0 // loop_footer
    %s21 = sadd.s32 1, %s17
  $region7: #{rnn_forward.3} parent=0 // loop_footer_branch
    %16 = sbr.rel target = $region3
  $region8: #{rnn_forward.3} parent=0 // loop_exit
    _

</llo_original>
